<compile_context>
chip_gen: v7x
topology: tpu7x:2x2x1
jax: 0.10.0
libtpu: 0.0.40
codegen_flags: <defaults>
</compile_context>

<pallas_src>
import jax
import jax.numpy as jnp
from jax.experimental import pallas as pl
from jax.experimental.pallas import tpu as pltpu

IN_DIM = 3 * 32 * 32   # 3072
H1 = 256
H2 = 64
H2_PAD = 128           # h2 padded to a full 128-lane tile
OUT_DIM = 10
OUT_PAD = 128          # lane-dense padded output width


def _round_up(x, m):
    return ((x + m - 1) // m) * m


def _mlp_kernel(x_ref, w1_ref, b1_ref, w2_ref, b2_ref, w3_ref, b3_ref, o_ref):
    # x_ref: (TB, 3072) f32; weights bf16; biases f32; o_ref: (TB, 128) f32.
    # bf16 cast done here (VPU, hidden under the x DMA) -- no separate wrapper cast op.
    x = x_ref[...].astype(jnp.bfloat16)
    # Layer 1: bf16 x bf16 -> f32 accumulate on the MXU; bias + ReLU in f32 on the VPU.
    h1 = jnp.dot(x, w1_ref[...], preferred_element_type=jnp.float32)
    h1 = jnp.maximum(h1 + b1_ref[...], 0.0)
    # Layer 2 (output padded 64 -> 128 lanes; padded columns are exactly 0 after ReLU).
    h2 = jnp.dot(h1.astype(jnp.bfloat16), w2_ref[...],
                 preferred_element_type=jnp.float32)
    h2 = jnp.maximum(h2 + b2_ref[...], 0.0)
    # Layer 3 (K=128 contraction, output padded to 128 lanes -> lane-dense store).
    out = jnp.dot(h2.astype(jnp.bfloat16), w3_ref[...],
                  preferred_element_type=jnp.float32)
    o_ref[...] = (out + b3_ref[...]).astype(o_ref.dtype)


def _choose_tb(B, tb_max):
    """Batch tile size. B <= 8: whole batch as one block (block dim == full array dim is
    always legal). Otherwise aim for >= 4 grid steps (v7x megacore, warm pipeline) with
    8-row (sublane) aligned tiles capped at tb_max."""
    if B <= 8:
        return B
    tb = _round_up(pl.cdiv(B, 4), 8)
    return int(max(8, min(tb, tb_max)))


def fc_layer_forward(x_nchw, packed_params, tb_max=512):
    """x_nchw: (B, 3, 32, 32) float32. Returns (B, 10) float32."""
    w1, b1, w2, b2, w3, b3 = packed_params
    B = x_nchw.shape[0]
    x = x_nchw.reshape(B, -1)                     # torch x.view(B, -1); stays f32

    TB = _choose_tb(B, tb_max)
    grid = (pl.cdiv(B, TB),)                      # ragged last block handled by Pallas

    # VMEM budget: f32 x tile (double-buffered) + f32 out tile (double-buffered)
    # + bf16 weights (double-buffered by default) + headroom for h1/h2 intermediates.
    vmem_bytes = (2 * TB * IN_DIM * 4 + 2 * TB * OUT_PAD * 4
                  + (IN_DIM * H1 + H1 * H2_PAD + H2_PAD * OUT_PAD) * 2 * 2
                  + 8 * 1024 * 1024)
    vmem_bytes = int(min(max(vmem_bytes, 32 * 1024 * 1024), 64 * 1024 * 1024))  # v7x-safe

    out_padded = pl.pallas_call(
        _mlp_kernel,
        out_shape=jax.ShapeDtypeStruct((B, OUT_PAD), jnp.float32),
        grid_spec=pl.GridSpec(
            grid=grid,
            in_specs=[
                pl.BlockSpec((TB, IN_DIM), lambda i: (i, 0)),     # x walks the batch
                pl.BlockSpec((IN_DIM, H1), lambda i: (0, 0)),     # weights stay resident
                pl.BlockSpec((1, H1), lambda i: (0, 0)),
                pl.BlockSpec((H1, H2_PAD), lambda i: (0, 0)),
                pl.BlockSpec((1, H2_PAD), lambda i: (0, 0)),
                pl.BlockSpec((H2_PAD, OUT_PAD), lambda i: (0, 0)),
                pl.BlockSpec((1, OUT_PAD), lambda i: (0, 0)),
            ],
            out_specs=pl.BlockSpec((TB, OUT_PAD), lambda i: (i, 0)),
        ),
        compiler_params=pltpu.CompilerParams(
            dimension_semantics=("parallel",),
            vmem_limit_bytes=vmem_bytes,
        ),
    )(x, w1, b1, w2, b2, w3, b3)

    return out_padded[:, :OUT_DIM]


def init_params(key):
    """f32 params mimicking PyTorch's default Linear init
    (uniform(-1/sqrt(fan_in), 1/sqrt(fan_in))). Weights stored as (in, out)."""
    def linear(k, fan_in, fan_out):
        kw, kb = jax.random.split(k)
        bound = 1.0 / jnp.sqrt(fan_in)
        w = jax.random.uniform(kw, (fan_in, fan_out), jnp.float32, -bound, bound)
        b = jax.random.uniform(kb, (1, fan_out), jnp.float32, -bound, bound)
        return w, b

    k1, k2, k3 = jax.random.split(key, 3)
    w1, b1 = linear(k1, IN_DIM, H1)
    w2, b2 = linear(k2, H1, H2)
    w3, b3 = linear(k3, H2, OUT_DIM)
    return (w1, b1, w2, b2, w3, b3)


def pack_params(params_f32):
    """Cast weights to bf16; zero-pad H2 64->128 (w2 cols, b2, w3 rows) and the output
    layer 10->128 lanes. Biases stay f32 (added on the f32 accumulator path)."""
    w1, b1, w2, b2, w3, b3 = params_f32
    w2p = jnp.zeros((H1, H2_PAD), jnp.float32).at[:, :H2].set(w2)
    b2p = jnp.zeros((1, H2_PAD), jnp.float32).at[:, :H2].set(b2)
    w3p = jnp.zeros((H2_PAD, OUT_PAD), jnp.float32).at[:H2, :OUT_DIM].set(w3)
    b3p = jnp.zeros((1, OUT_PAD), jnp.float32).at[:, :OUT_DIM].set(b3)
    return (w1.astype(jnp.bfloat16), b1,
            w2p.astype(jnp.bfloat16), b2p,
            w3p.astype(jnp.bfloat16), b3p)


def _reference_forward_bf16(x_nchw, params_f32):
    """Reference matching the kernel's numerics: bf16 matmul inputs, f32 accumulate."""
    w1, b1, w2, b2, w3, b3 = params_f32
    bf = lambda a: a.astype(jnp.bfloat16)
    x = bf(x_nchw.reshape(x_nchw.shape[0], -1))
    h1 = jnp.maximum(jnp.dot(x, bf(w1), preferred_element_type=jnp.float32) + b1, 0.0)
    h2 = jnp.maximum(jnp.dot(bf(h1), bf(w2), preferred_element_type=jnp.float32) + b2, 0.0)
    return jnp.dot(bf(h2), bf(w3), preferred_element_type=jnp.float32) + b3


if __name__ == "__main__":
    key = jax.random.PRNGKey(0)
    k_params, k_x = jax.random.split(key)

    params_f32 = init_params(k_params)
    params = pack_params(params_f32)

    # Small batch consistent with the module's 3*32*32 flatten.
    x = jax.random.normal(k_x, (2, 3, 32, 32), jnp.float32)
    out = jax.block_until_ready(fc_layer_forward(x, params))
    ref = _reference_forward_bf16(x, params_f32)
    assert out.shape == (2, OUT_DIM)
    assert jnp.allclose(out, ref, atol=2e-3, rtol=2e-3), (
        float(jnp.max(jnp.abs(out - ref))))

    # Exercise the multi-step grid + ragged last block path (B=20 -> TB=8, grid=3).
    x2 = jax.random.normal(jax.random.PRNGKey(1), (20, 3, 32, 32), jnp.float32)
    out2 = jax.block_until_ready(fc_layer_forward(x2, params))
    ref2 = _reference_forward_bf16(x2, params_f32)
    assert out2.shape == (20, OUT_DIM)
    assert jnp.allclose(out2, ref2, atol=2e-3, rtol=2e-3), (
        float(jnp.max(jnp.abs(out2 - ref2))))

    print("KERNEL_OK")
</pallas_src>

<mosaic_0001>
module attributes {stable_mosaic.version = 11 : i64} {
  func.func @_mlp_kernel(%arg0: i32, %arg1: memref<2x3072xf32, #tpu.memory_space<vmem>>, %arg2: memref<3072x256xbf16, #tpu.memory_space<vmem>>, %arg3: memref<1x256xf32, #tpu.memory_space<vmem>>, %arg4: memref<256x128xbf16, #tpu.memory_space<vmem>>, %arg5: memref<1x128xf32, #tpu.memory_space<vmem>>, %arg6: memref<128x128xbf16, #tpu.memory_space<vmem>>, %arg7: memref<1x128xf32, #tpu.memory_space<vmem>>, %arg8: memref<2x128xf32, #tpu.memory_space<vmem>>) attributes {dimension_semantics = [#tpu.dimension_semantics<parallel>], iteration_bounds = array<i64: 1>, scalar_prefetch = 0 : i64, scratch_operands = 0 : i64, tpu.core_type = #tpu.core_type<tc>, window_params = [{transform_indices = @transform_0, window_bounds = array<i64: 2, 3072>}, {pipeline_mode = #tpu.pipeline_mode<synchronous>, transform_indices = @transform_1, window_bounds = array<i64: 3072, 256>}, {pipeline_mode = #tpu.pipeline_mode<synchronous>, transform_indices = @transform_2, window_bounds = array<i64: 1, 256>}, {pipeline_mode = #tpu.pipeline_mode<synchronous>, transform_indices = @transform_3, window_bounds = array<i64: 256, 128>}, {pipeline_mode = #tpu.pipeline_mode<synchronous>, transform_indices = @transform_4, window_bounds = array<i64: 1, 128>}, {pipeline_mode = #tpu.pipeline_mode<synchronous>, transform_indices = @transform_5, window_bounds = array<i64: 128, 128>}, {pipeline_mode = #tpu.pipeline_mode<synchronous>, transform_indices = @transform_6, window_bounds = array<i64: 1, 128>}, {transform_indices = @transform_7, window_bounds = array<i64: 2, 128>}]} {
    %c0 = arith.constant 0 : index
    %c0_0 = arith.constant 0 : index
    %0 = vector.load %arg1[%c0, %c0_0] : memref<2x3072xf32, #tpu.memory_space<vmem>>, vector<2x3072xf32>
    %1 = arith.truncf %0 : vector<2x3072xf32> to vector<2x3072xbf16>
    %c0_1 = arith.constant 0 : index
    %c0_2 = arith.constant 0 : index
    %2 = vector.load %arg2[%c0_1, %c0_2] : memref<3072x256xbf16, #tpu.memory_space<vmem>>, vector<3072x256xbf16>
    %cst = arith.constant dense<0.000000e+00> : vector<2x256xf32>
    %3 = tpu.matmul %1, %2, %cst {dimension_numbers = #tpu.dot_dimension_numbers<[1], [0], [0], [1], [0, 0, 1, 1], [], []>} : vector<2x3072xbf16>, vector<3072x256xbf16>, vector<2x256xf32> -> vector<2x256xf32>
    %c0_3 = arith.constant 0 : index
    %c0_4 = arith.constant 0 : index
    %4 = vector.load %arg3[%c0_3, %c0_4] : memref<1x256xf32, #tpu.memory_space<vmem>>, vector<1x256xf32>
    %5 = vector.broadcast %4 : vector<1x256xf32> to vector<2x256xf32>
    %6 = arith.addf %3, %5 : vector<2x256xf32>
    %cst_5 = arith.constant 0.000000e+00 : f32
    %7 = vector.broadcast %cst_5 : f32 to vector<2x256xf32>
    %8 = arith.maximumf %6, %7 : vector<2x256xf32>
    %9 = arith.truncf %8 : vector<2x256xf32> to vector<2x256xbf16>
    %c0_6 = arith.constant 0 : index
    %c0_7 = arith.constant 0 : index
    %10 = vector.load %arg4[%c0_6, %c0_7] : memref<256x128xbf16, #tpu.memory_space<vmem>>, vector<256x128xbf16>
    %cst_8 = arith.constant dense<0.000000e+00> : vector<2x128xf32>
    %11 = tpu.matmul %9, %10, %cst_8 {dimension_numbers = #tpu.dot_dimension_numbers<[1], [0], [0], [1], [0, 0, 1, 1], [], []>} : vector<2x256xbf16>, vector<256x128xbf16>, vector<2x128xf32> -> vector<2x128xf32>
    %c0_9 = arith.constant 0 : index
    %c0_10 = arith.constant 0 : index
    %12 = vector.load %arg5[%c0_9, %c0_10] : memref<1x128xf32, #tpu.memory_space<vmem>>, vector<1x128xf32>
    %13 = vector.broadcast %12 : vector<1x128xf32> to vector<2x128xf32>
    %14 = arith.addf %11, %13 : vector<2x128xf32>
    %cst_11 = arith.constant 0.000000e+00 : f32
    %15 = vector.broadcast %cst_11 : f32 to vector<2x128xf32>
    %16 = arith.maximumf %14, %15 : vector<2x128xf32>
    %17 = arith.truncf %16 : vector<2x128xf32> to vector<2x128xbf16>
    %c0_12 = arith.constant 0 : index
    %c0_13 = arith.constant 0 : index
    %18 = vector.load %arg6[%c0_12, %c0_13] : memref<128x128xbf16, #tpu.memory_space<vmem>>, vector<128x128xbf16>
    %cst_14 = arith.constant dense<0.000000e+00> : vector<2x128xf32>
    %19 = tpu.matmul %17, %18, %cst_14 {dimension_numbers = #tpu.dot_dimension_numbers<[1], [0], [0], [1], [0, 0, 1, 1], [], []>} : vector<2x128xbf16>, vector<128x128xbf16>, vector<2x128xf32> -> vector<2x128xf32>
    %c0_15 = arith.constant 0 : index
    %c0_16 = arith.constant 0 : index
    %20 = vector.load %arg7[%c0_15, %c0_16] : memref<1x128xf32, #tpu.memory_space<vmem>>, vector<1x128xf32>
    %21 = vector.broadcast %20 : vector<1x128xf32> to vector<2x128xf32>
    %22 = arith.addf %19, %21 : vector<2x128xf32>
    %c0_17 = arith.constant 0 : index
    %c0_18 = arith.constant 0 : index
    %23 = vector.load %arg8[%c0_17, %c0_18] : memref<2x128xf32, #tpu.memory_space<vmem>>, vector<2x128xf32>
    tpu.vector_store %arg8[%c0_17, %c0_18], %22 {strides = array<i32>} : memref<2x128xf32, #tpu.memory_space<vmem>>, vector<2x128xf32>,
    return
  }
  func.func @transform_0(%arg0: i32) -> (i32, i32) {
    %c0_i32 = arith.constant 0 : i32
    %c0_i32_0 = arith.constant 0 : i32
    return %arg0, %c0_i32 : i32, i32
  }
  func.func @transform_1(%arg0: i32) -> (i32, i32) {
    %c0_i32 = arith.constant 0 : i32
    %c0_i32_0 = arith.constant 0 : i32
    %c0_i32_1 = arith.constant 0 : i32
    return %c0_i32, %c0_i32_0 : i32, i32
  }
  func.func @transform_2(%arg0: i32) -> (i32, i32) {
    %c0_i32 = arith.constant 0 : i32
    %c0_i32_0 = arith.constant 0 : i32
    %c0_i32_1 = arith.constant 0 : i32
    return %c0_i32, %c0_i32_0 : i32, i32
  }
  func.func @transform_3(%arg0: i32) -> (i32, i32) {
    %c0_i32 = arith.constant 0 : i32
    %c0_i32_0 = arith.constant 0 : i32
    %c0_i32_1 = arith.constant 0 : i32
    return %c0_i32, %c0_i32_0 : i32, i32
  }
  func.func @transform_4(%arg0: i32) -> (i32, i32) {
    %c0_i32 = arith.constant 0 : i32
    %c0_i32_0 = arith.constant 0 : i32
    %c0_i32_1 = arith.constant 0 : i32
    return %c0_i32, %c0_i32_0 : i32, i32
  }
  func.func @transform_5(%arg0: i32) -> (i32, i32) {
    %c0_i32 = arith.constant 0 : i32
    %c0_i32_0 = arith.constant 0 : i32
    %c0_i32_1 = arith.constant 0 : i32
    return %c0_i32, %c0_i32_0 : i32, i32
  }
  func.func @transform_6(%arg0: i32) -> (i32, i32) {
    %c0_i32 = arith.constant 0 : i32
    %c0_i32_0 = arith.constant 0 : i32
    %c0_i32_1 = arith.constant 0 : i32
    return %c0_i32, %c0_i32_0 : i32, i32
  }
  func.func @transform_7(%arg0: i32) -> (i32, i32) {
    %c0_i32 = arith.constant 0 : i32
    %c0_i32_0 = arith.constant 0 : i32
    return %arg0, %c0_i32 : i32, i32
  }
}

</mosaic_0001>

<llo_original>
// kernel: tpu_custom_call.1
$region0: #{tpu_custom_call.1}
  #allocation0 [shape = 'u32[]', space=smem, size = 0x4, offset = 0x4, fixed_abs, tag = 'smem constant byte address 0x4 - core index']
  #allocation1 [shape = 'u32[144,128]{1,0:T(1,128)}', space=vmem, size = 0x12000, scoped, tag = 'internal scratch']
  %s0 = inlined_call_operand.hbm [shape: f32[2,3072], index: 0, kind: input, shape index: {}]
  %s1 = inlined_call_operand.hbm [shape: bf16[3072,256], index: 1, kind: input, shape index: {}]
  %s2 = inlined_call_operand.hbm [shape: f32[1,256], index: 2, kind: input, shape index: {}]
  %s3 = inlined_call_operand.hbm [shape: bf16[256,128], index: 3, kind: input, shape index: {}]
  %s4 = inlined_call_operand.hbm [shape: f32[1,128], index: 4, kind: input, shape index: {}]
  %s5 = inlined_call_operand.hbm [shape: bf16[128,128], index: 5, kind: input, shape index: {}]
  %s6 = inlined_call_operand.hbm [shape: f32[1,128], index: 6, kind: input, shape index: {}]
  %s7 = inlined_call_operand.hbm [shape: f32[2,128], index: 7, kind: output, shape index: {}]
  %s8 = sld [smem:[#allocation0]]
  $region66: #{tpu_custom_call.1} parent=0
    _
  %s10 = ssub.s32 1, %s8
  %s11 = scalar_select 0, %s10, %s8
  $region1: #{tpu_custom_call.1} parent=0
    #allocation2 [shape = 'u8[24576]{0}', space=vmem, size = 0x6000, scoped, tag = 'input window, operand 0, single buffered']
    #allocation3 [shape = 's32[1]{0}', space=sflag, size = 0x4, scoped, tag = 'scoped memory for tpu_custom_call.1']
    #allocation4 [shape = 's32[1]{0}', space=sflag, size = 0x4, scoped, tag = 'scoped memory for tpu_custom_call.1']
    #allocation5 [shape = 'u8[1572864]{0}', space=vmem, size = 0x180000, scoped, tag = 'input window, operand 1, single buffered']
    #allocation6 [shape = 's32[1]{0}', space=sflag, size = 0x4, scoped, tag = 'scoped memory for tpu_custom_call.1']
    #allocation7 [shape = 'u8[1024]{0}', space=vmem, size = 0x400, scoped, tag = 'input window, operand 2, single buffered']
    #allocation8 [shape = 'u8[65536]{0}', space=vmem, size = 0x10000, scoped, tag = 'input window, operand 3, single buffered']
    #allocation9 [shape = 's32[1]{0}', space=sflag, size = 0x4, scoped, tag = 'scoped memory for tpu_custom_call.1']
    #allocation10 [shape = 'u8[512]{0}', space=vmem, size = 0x400, scoped, tag = 'input window, operand 4, single buffered']
    #allocation11 [shape = 'u8[32768]{0}', space=vmem, size = 0x8000, scoped, tag = 'input window, operand 5, single buffered']
    #allocation12 [shape = 's32[1]{0}', space=sflag, size = 0x4, scoped, tag = 'scoped memory for tpu_custom_call.1']
    #allocation13 [shape = 'u8[512]{0}', space=vmem, size = 0x400, scoped, tag = 'input window, operand 6, single buffered']
    #allocation14 [shape = 'u8[1024]{0}', space=vmem, size = 0x400, scoped, tag = 'output window, operand 0, single buffered']
    %12 = vsyncpa [#allocation3], 0
    %13 = vsyncpa [#allocation6], 0
    %14 = vsyncpa [#allocation9], 0
    %15 = vsyncpa [#allocation12], 0
    %16 = vsyncpa [#allocation4], 0
    // Predicated region
    $region2: #{tpu_custom_call.1} parent=1 // pred_check
      _
    $region3: #{tpu_custom_call.1} parent=1 // pred_check_branch
      %18 = sbr.rel (0) target = $region5
    $region4: #{tpu_custom_call.1} parent=1 // pred_region
      %s20 = ssub.s32 768, 768
      %21 = vsyncadd [#allocation3], %s20
      %s23 = sshll.u32 [#allocation2], 4
      %s24 = int_to_ptr.vmem [resolvable:$true] %s23
      %26 = dma.hbm_to_vmem [thread:$0]  %s0, 768, %s24, [#allocation3]
    $region5: #{tpu_custom_call.1} parent=1 // pred_fallthru
      _
    // Predicated region
    $region6: #{tpu_custom_call.1} parent=1 // pred_check
      _
    $region7: #{tpu_custom_call.1} parent=1 // pred_check_branch
      %28 = sbr.rel (0) target = $region9
    $region8: #{tpu_custom_call.1} parent=1 // pred_region
      %s30 = ssub.s32 49152, 49152
      %31 = vsyncadd [#allocation6], %s30
      %s32 = sshll.u32 [#allocation5], 4
      %s33 = int_to_ptr.vmem [resolvable:$true] %s32
      %38 = dma.hbm_to_vmem [thread:$0]  %s1, 49152, %s33, [#allocation6], 128, 128, 8
    $region9: #{tpu_custom_call.1} parent=1 // pred_fallthru
      _
    // Predicated region
    $region10: #{tpu_custom_call.1} parent=1 // pred_check
      _
    $region11: #{tpu_custom_call.1} parent=1 // pred_check_branch
      %40 = sbr.rel (0) target = $region13
    $region12: #{tpu_custom_call.1} parent=1 // pred_region
      %s42 = ssub.s32 32, 32
      %43 = vsyncadd [#allocation6], %s42
      %s45 = sshll.u32 [#allocation7], 4
      %s46 = int_to_ptr.vmem [resolvable:$true] %s45
      %48 = dma.hbm_to_vmem [thread:$0]  %s2, 32, %s46, [#allocation6]
    $region13: #{tpu_custom_call.1} parent=1 // pred_fallthru
      _
    // Predicated region
    $region14: #{tpu_custom_call.1} parent=1 // pred_check
      _
    $region15: #{tpu_custom_call.1} parent=1 // pred_check_branch
      %50 = sbr.rel (0) target = $region17
    $region16: #{tpu_custom_call.1} parent=1 // pred_region
      %s52 = ssub.s32 2048, 2048
      %53 = vsyncadd [#allocation9], %s52
      %s54 = sshll.u32 [#allocation8], 4
      %s55 = int_to_ptr.vmem [resolvable:$true] %s54
      %60 = dma.hbm_to_vmem [thread:$0]  %s3, 2048, %s55, [#allocation9], 64, 64, 4
    $region17: #{tpu_custom_call.1} parent=1 // pred_fallthru
      _
    // Predicated region
    $region18: #{tpu_custom_call.1} parent=1 // pred_check
      _
    $region19: #{tpu_custom_call.1} parent=1 // pred_check_branch
      %62 = sbr.rel (0) target = $region21
    $region20: #{tpu_custom_call.1} parent=1 // pred_region
      %s64 = ssub.s32 16, 16
      %65 = vsyncadd [#allocation9], %s64
      %s67 = sshll.u32 [#allocation10], 4
      %s68 = int_to_ptr.vmem [resolvable:$true] %s67
      %70 = dma.hbm_to_vmem [thread:$0]  %s4, 16, %s68, [#allocation9]
    $region21: #{tpu_custom_call.1} parent=1 // pred_fallthru
      _
    // Predicated region
    $region22: #{tpu_custom_call.1} parent=1 // pred_check
      _
    $region23: #{tpu_custom_call.1} parent=1 // pred_check_branch
      %72 = sbr.rel (0) target = $region25
    $region24: #{tpu_custom_call.1} parent=1 // pred_region
      %s74 = ssub.s32 1024, 1024
      %75 = vsyncadd [#allocation12], %s74
      %s76 = sshll.u32 [#allocation11], 4
      %s77 = int_to_ptr.vmem [resolvable:$true] %s76
      %82 = dma.hbm_to_vmem [thread:$0]  %s5, 1024, %s77, [#allocation12], 64, 64, 4
    $region25: #{tpu_custom_call.1} parent=1 // pred_fallthru
      _
    // Predicated region
    $region26: #{tpu_custom_call.1} parent=1 // pred_check
      _
    $region27: #{tpu_custom_call.1} parent=1 // pred_check_branch
      %84 = sbr.rel (0) target = $region29
    $region28: #{tpu_custom_call.1} parent=1 // pred_region
      %s86 = ssub.s32 16, 16
      %87 = vsyncadd [#allocation12], %s86
      %s89 = sshll.u32 [#allocation13], 4
      %s90 = int_to_ptr.vmem [resolvable:$true] %s89
      %92 = dma.hbm_to_vmem [thread:$0]  %s6, 16, %s90, [#allocation12]
    $region29: #{tpu_custom_call.1} parent=1 // pred_fallthru
      _
    // Predicated region
    $region30: #{tpu_custom_call.1} parent=1 // pred_check
      _
    $region31: #{tpu_custom_call.1} parent=1 // pred_check_branch
      %94 = sbr.rel (0) target = $region33
    $region32: #{tpu_custom_call.1} parent=1 // pred_region
      %95 = dma.done [#allocation3], 768
    $region33: #{tpu_custom_call.1} parent=1 // pred_fallthru
      _
    // Predicated region
    $region34: #{tpu_custom_call.1} parent=1 // pred_check
      _
    $region35: #{tpu_custom_call.1} parent=1 // pred_check_branch
      %97 = sbr.rel (0) target = $region37
    $region36: #{tpu_custom_call.1} parent=1 // pred_region
      %98 = dma.done [#allocation6], 49152
    $region37: #{tpu_custom_call.1} parent=1 // pred_fallthru
      _
    // Predicated region
    $region38: #{tpu_custom_call.1} parent=1 // pred_check
      _
    $region39: #{tpu_custom_call.1} parent=1 // pred_check_branch
      %100 = sbr.rel (0) target = $region41
    $region40: #{tpu_custom_call.1} parent=1 // pred_region
      %101 = dma.done [#allocation6], 32
    $region41: #{tpu_custom_call.1} parent=1 // pred_fallthru
      _
    // Predicated region
    $region42: #{tpu_custom_call.1} parent=1 // pred_check
      _
    $region43: #{tpu_custom_call.1} parent=1 // pred_check_branch
      %103 = sbr.rel (0) target = $region45
    $region44: #{tpu_custom_call.1} parent=1 // pred_region
      %104 = dma.done [#allocation9], 2048
    $region45: #{tpu_custom_call.1} parent=1 // pred_fallthru
      _
    // Predicated region
    $region46: #{tpu_custom_call.1} parent=1 // pred_check
      _
    $region47: #{tpu_custom_call.1} parent=1 // pred_check_branch
      %106 = sbr.rel (0) target = $region49
    $region48: #{tpu_custom_call.1} parent=1 // pred_region
      %107 = dma.done [#allocation9], 16
    $region49: #{tpu_custom_call.1} parent=1 // pred_fallthru
      _
    // Predicated region
    $region50: #{tpu_custom_call.1} parent=1 // pred_check
      _
    $region51: #{tpu_custom_call.1} parent=1 // pred_check_branch
      %109 = sbr.rel (0) target = $region53
    $region52: #{tpu_custom_call.1} parent=1 // pred_region
      %110 = dma.done [#allocation12], 1024
    $region53: #{tpu_custom_call.1} parent=1 // pred_fallthru
      _
    // Predicated region
    $region54: #{tpu_custom_call.1} parent=1 // pred_check
      _
    $region55: #{tpu_custom_call.1} parent=1 // pred_check_branch
      %112 = sbr.rel (0) target = $region57
    $region56: #{tpu_custom_call.1} parent=1 // pred_region
      %113 = dma.done [#allocation12], 16
    $region57: #{tpu_custom_call.1} parent=1 // pred_fallthru
      _
    %v115 = vld [vmem:[#allocation2] sm:$0xff]
    %v116 = vld [vmem:[#allocation2 + $0x8] sm:$0xff]
    %v117 = vld [vmem:[#allocation2 + $0x10] sm:$0xff]
    %v118 = vld [vmem:[#allocation2 + $0x18] sm:$0xff]
    %v119 = vld [vmem:[#allocation2 + $0x20] sm:$0xff]
    %v120 = vld [vmem:[#allocation2 + $0x28] sm:$0xff]
    %v127 = vcombine.high %v115, %v115
    %v129 = vunpack.c.l.s4 1983009808
    %v130 = vunpack.c.0.s8 %v129
    %v131 = vlaneseq
    %v132 = vshrl.u32 %v131, 7
    %v133 = vsub.s32 %v130, %v132
    %v134 = vrot.slane %v115, %v133
    %v136 = vunpack.c.l.s4 1983009808
    %v137 = vunpack.c.0.s8 %v136
    %v138 = vlaneseq
    %v139 = vshrl.u32 %v138, 7
    %v140 = vsub.s32 %v137, %v139
    %v141 = vrot.slane %v127, %v140
    %v142 = vcombine.high %v134, %v134
    %v143 = vcombine.high %v141, %v141
    %v144 = vcombine.high %v116, %v116
    %v146 = vunpack.c.l.s4 1983009808
    %v147 = vunpack.c.0.s8 %v146
    %v148 = vlaneseq
    %v149 = vshrl.u32 %v148, 7
    %v150 = vsub.s32 %v147, %v149
    %v151 = vrot.slane %v116, %v150
    %v153 = vunpack.c.l.s4 1983009808
    %v154 = vunpack.c.0.s8 %v153
    %v155 = vlaneseq
    %v156 = vshrl.u32 %v155, 7
    %v157 = vsub.s32 %v154, %v156
    %v158 = vrot.slane %v144, %v157
    %v159 = vcombine.high %v151, %v151
    %v160 = vcombine.high %v158, %v158
    %v161 = vcombine.high %v117, %v117
    %v163 = vunpack.c.l.s4 1983009808
    %v164 = vunpack.c.0.s8 %v163
    %v165 = vlaneseq
    %v166 = vshrl.u32 %v165, 7
    %v167 = vsub.s32 %v164, %v166
    %v168 = vrot.slane %v117, %v167
    %v170 = vunpack.c.l.s4 1983009808
    %v171 = vunpack.c.0.s8 %v170
    %v172 = vlaneseq
    %v173 = vshrl.u32 %v172, 7
    %v174 = vsub.s32 %v171, %v173
    %v175 = vrot.slane %v161, %v174
    %v176 = vcombine.high %v168, %v168
    %v177 = vcombine.high %v175, %v175
    %v178 = vcombine.high %v118, %v118
    %v180 = vunpack.c.l.s4 1983009808
    %v181 = vunpack.c.0.s8 %v180
    %v182 = vlaneseq
    %v183 = vshrl.u32 %v182, 7
    %v184 = vsub.s32 %v181, %v183
    %v185 = vrot.slane %v118, %v184
    %v187 = vunpack.c.l.s4 1983009808
    %v188 = vunpack.c.0.s8 %v187
    %v189 = vlaneseq
    %v190 = vshrl.u32 %v189, 7
    %v191 = vsub.s32 %v188, %v190
    %v192 = vrot.slane %v178, %v191
    %v193 = vcombine.high %v185, %v185
    %v194 = vcombine.high %v192, %v192
    %v195 = vcombine.high %v119, %v119
    %v197 = vunpack.c.l.s4 1983009808
    %v198 = vunpack.c.0.s8 %v197
    %v199 = vlaneseq
    %v200 = vshrl.u32 %v199, 7
    %v201 = vsub.s32 %v198, %v200
    %v202 = vrot.slane %v119, %v201
    %v204 = vunpack.c.l.s4 1983009808
    %v205 = vunpack.c.0.s8 %v204
    %v206 = vlaneseq
    %v207 = vshrl.u32 %v206, 7
    %v208 = vsub.s32 %v205, %v207
    %v209 = vrot.slane %v195, %v208
    %v210 = vcombine.high %v202, %v202
    %v211 = vcombine.high %v209, %v209
    %v212 = vcombine.high %v120, %v120
    %v214 = vunpack.c.l.s4 1983009808
    %v215 = vunpack.c.0.s8 %v214
    %v216 = vlaneseq
    %v217 = vshrl.u32 %v216, 7
    %v218 = vsub.s32 %v215, %v217
    %v219 = vrot.slane %v120, %v218
    %v221 = vunpack.c.l.s4 1983009808
    %v222 = vunpack.c.0.s8 %v221
    %v223 = vlaneseq
    %v224 = vshrl.u32 %v223, 7
    %v225 = vsub.s32 %v222, %v224
    %v226 = vrot.slane %v212, %v225
    %v227 = vcombine.high %v219, %v219
    %v228 = vcombine.high %v226, %v226
    %v253 = vpack.c.bf16 %v134, %v134
    %v254 = vpack.c.bf16 %v142, %v142
    %v255 = vpack.c.bf16 %v141, %v141
    %v256 = vpack.c.bf16 %v143, %v143
    %v257 = vpack.c.bf16 %v151, %v151
    %v258 = vpack.c.bf16 %v159, %v159
    %v259 = vpack.c.bf16 %v158, %v158
    %v260 = vpack.c.bf16 %v160, %v160
    %v261 = vpack.c.bf16 %v168, %v168
    %v262 = vpack.c.bf16 %v176, %v176
    %v263 = vpack.c.bf16 %v175, %v175
    %v264 = vpack.c.bf16 %v177, %v177
    %v265 = vpack.c.bf16 %v185, %v185
    %v266 = vpack.c.bf16 %v193, %v193
    %v267 = vpack.c.bf16 %v192, %v192
    %v268 = vpack.c.bf16 %v194, %v194
    %v269 = vpack.c.bf16 %v202, %v202
    %v270 = vpack.c.bf16 %v210, %v210
    %v271 = vpack.c.bf16 %v209, %v209
    %v272 = vpack.c.bf16 %v211, %v211
    %v273 = vpack.c.bf16 %v219, %v219
    %v274 = vpack.c.bf16 %v227, %v227
    %v275 = vpack.c.bf16 %v226, %v226
    %v276 = vpack.c.bf16 %v228, %v228
    %v277 = vld [vmem:[#allocation5] sm:$0xff]
    %v278 = vld [vmem:[#allocation5 + $0x8] sm:$0xff]
    %v279 = vld [vmem:[#allocation5 + $0x10] sm:$0xff]
    %v280 = vld [vmem:[#allocation5 + $0x18] sm:$0xff]
    %v281 = vld [vmem:[#allocation5 + $0x20] sm:$0xff]
    %v282 = vld [vmem:[#allocation5 + $0x28] sm:$0xff]
    %v283 = vld [vmem:[#allocation5 + $0x30] sm:$0xff]
    %v284 = vld [vmem:[#allocation5 + $0x38] sm:$0xff]
    %v285 = vld [vmem:[#allocation5 + $0x40] sm:$0xff]
    %v286 = vld [vmem:[#allocation5 + $0x48] sm:$0xff]
    %v287 = vld [vmem:[#allocation5 + $0x50] sm:$0xff]
    %v288 = vld [vmem:[#allocation5 + $0x58] sm:$0xff]
    %v289 = vld [vmem:[#allocation5 + $0x60] sm:$0xff]
    %v290 = vld [vmem:[#allocation5 + $0x68] sm:$0xff]
    %v291 = vld [vmem:[#allocation5 + $0x70] sm:$0xff]
    %v292 = vld [vmem:[#allocation5 + $0x78] sm:$0xff]
    %v293 = vld [vmem:[#allocation5 + $0x80] sm:$0xff]
    %v294 = vld [vmem:[#allocation5 + $0x88] sm:$0xff]
    %v295 = vld [vmem:[#allocation5 + $0x90] sm:$0xff]
    %v296 = vld [vmem:[#allocation5 + $0x98] sm:$0xff]
    %v297 = vld [vmem:[#allocation5 + $0xa0] sm:$0xff]
    %v298 = vld [vmem:[#allocation5 + $0xa8] sm:$0xff]
    %v299 = vld [vmem:[#allocation5 + $0xb0] sm:$0xff]
    %v300 = vld [vmem:[#allocation5 + $0xb8] sm:$0xff]
    %v301 = vld [vmem:[#allocation5 + $0xc0] sm:$0xff]
    %v302 = vld [vmem:[#allocation5 + $0xc8] sm:$0xff]
    %v303 = vld [vmem:[#allocation5 + $0xd0] sm:$0xff]
    %v304 = vld [vmem:[#allocation5 + $0xd8] sm:$0xff]
    %v305 = vld [vmem:[#allocation5 + $0xe0] sm:$0xff]
    %v306 = vld [vmem:[#allocation5 + $0xe8] sm:$0xff]
    %v307 = vld [vmem:[#allocation5 + $0xf0] sm:$0xff]
    %v308 = vld [vmem:[#allocation5 + $0xf8] sm:$0xff]
    %v309 = vld [vmem:[#allocation5 + $0x100] sm:$0xff]
    %v310 = vld [vmem:[#allocation5 + $0x108] sm:$0xff]
    %v311 = vld [vmem:[#allocation5 + $0x110] sm:$0xff]
    %v312 = vld [vmem:[#allocation5 + $0x118] sm:$0xff]
    %v313 = vld [vmem:[#allocation5 + $0x120] sm:$0xff]
    %v314 = vld [vmem:[#allocation5 + $0x128] sm:$0xff]
    %v315 = vld [vmem:[#allocation5 + $0x130] sm:$0xff]
    %v316 = vld [vmem:[#allocation5 + $0x138] sm:$0xff]
    %v317 = vld [vmem:[#allocation5 + $0x140] sm:$0xff]
    %v318 = vld [vmem:[#allocation5 + $0x148] sm:$0xff]
    %v319 = vld [vmem:[#allocation5 + $0x150] sm:$0xff]
    %v320 = vld [vmem:[#allocation5 + $0x158] sm:$0xff]
    %v321 = vld [vmem:[#allocation5 + $0x160] sm:$0xff]
    %v322 = vld [vmem:[#allocation5 + $0x168] sm:$0xff]
    %v323 = vld [vmem:[#allocation5 + $0x170] sm:$0xff]
    %v324 = vld [vmem:[#allocation5 + $0x178] sm:$0xff]
    %v325 = vld [vmem:[#allocation5 + $0x180] sm:$0xff]
    %v326 = vld [vmem:[#allocation5 + $0x188] sm:$0xff]
    %v327 = vld [vmem:[#allocation5 + $0x190] sm:$0xff]
    %v328 = vld [vmem:[#allocation5 + $0x198] sm:$0xff]
    %v329 = vld [vmem:[#allocation5 + $0x1a0] sm:$0xff]
    %v330 = vld [vmem:[#allocation5 + $0x1a8] sm:$0xff]
    %v331 = vld [vmem:[#allocation5 + $0x1b0] sm:$0xff]
    %v332 = vld [vmem:[#allocation5 + $0x1b8] sm:$0xff]
    %v333 = vld [vmem:[#allocation5 + $0x1c0] sm:$0xff]
    %v334 = vld [vmem:[#allocation5 + $0x1c8] sm:$0xff]
    %v335 = vld [vmem:[#allocation5 + $0x1d0] sm:$0xff]
    %v336 = vld [vmem:[#allocation5 + $0x1d8] sm:$0xff]
    %v337 = vld [vmem:[#allocation5 + $0x1e0] sm:$0xff]
    %v338 = vld [vmem:[#allocation5 + $0x1e8] sm:$0xff]
    %v339 = vld [vmem:[#allocation5 + $0x1f0] sm:$0xff]
    %v340 = vld [vmem:[#allocation5 + $0x1f8] sm:$0xff]
    %v341 = vld [vmem:[#allocation5 + $0x200] sm:$0xff]
    %v342 = vld [vmem:[#allocation5 + $0x208] sm:$0xff]
    %v343 = vld [vmem:[#allocation5 + $0x210] sm:$0xff]
    %v344 = vld [vmem:[#allocation5 + $0x218] sm:$0xff]
    %v345 = vld [vmem:[#allocation5 + $0x220] sm:$0xff]
    %v346 = vld [vmem:[#allocation5 + $0x228] sm:$0xff]
    %v347 = vld [vmem:[#allocation5 + $0x230] sm:$0xff]
    %v348 = vld [vmem:[#allocation5 + $0x238] sm:$0xff]
    %v349 = vld [vmem:[#allocation5 + $0x240] sm:$0xff]
    %v350 = vld [vmem:[#allocation5 + $0x248] sm:$0xff]
    %v351 = vld [vmem:[#allocation5 + $0x250] sm:$0xff]
    %v352 = vld [vmem:[#allocation5 + $0x258] sm:$0xff]
    %v353 = vld [vmem:[#allocation5 + $0x260] sm:$0xff]
    %v354 = vld [vmem:[#allocation5 + $0x268] sm:$0xff]
    %v355 = vld [vmem:[#allocation5 + $0x270] sm:$0xff]
    %v356 = vld [vmem:[#allocation5 + $0x278] sm:$0xff]
    %v357 = vld [vmem:[#allocation5 + $0x280] sm:$0xff]
    %v358 = vld [vmem:[#allocation5 + $0x288] sm:$0xff]
    %v359 = vld [vmem:[#allocation5 + $0x290] sm:$0xff]
    %v360 = vld [vmem:[#allocation5 + $0x298] sm:$0xff]
    %v361 = vld [vmem:[#allocation5 + $0x2a0] sm:$0xff]
    %v362 = vld [vmem:[#allocation5 + $0x2a8] sm:$0xff]
    %v363 = vld [vmem:[#allocation5 + $0x2b0] sm:$0xff]
    %v364 = vld [vmem:[#allocation5 + $0x2b8] sm:$0xff]
    %v365 = vld [vmem:[#allocation5 + $0x2c0] sm:$0xff]
    %v366 = vld [vmem:[#allocation5 + $0x2c8] sm:$0xff]
    %v367 = vld [vmem:[#allocation5 + $0x2d0] sm:$0xff]
    %v368 = vld [vmem:[#allocation5 + $0x2d8] sm:$0xff]
    %v369 = vld [vmem:[#allocation5 + $0x2e0] sm:$0xff]
    %v370 = vld [vmem:[#allocation5 + $0x2e8] sm:$0xff]
    %v371 = vld [vmem:[#allocation5 + $0x2f0] sm:$0xff]
    %v372 = vld [vmem:[#allocation5 + $0x2f8] sm:$0xff]
    %v373 = vld [vmem:[#allocation5 + $0x300] sm:$0xff]
    %v374 = vld [vmem:[#allocation5 + $0x308] sm:$0xff]
    %v375 = vld [vmem:[#allocation5 + $0x310] sm:$0xff]
    %v376 = vld [vmem:[#allocation5 + $0x318] sm:$0xff]
    %v377 = vld [vmem:[#allocation5 + $0x320] sm:$0xff]
    %v378 = vld [vmem:[#allocation5 + $0x328] sm:$0xff]
    %v379 = vld [vmem:[#allocation5 + $0x330] sm:$0xff]
    %v380 = vld [vmem:[#allocation5 + $0x338] sm:$0xff]
    %v381 = vld [vmem:[#allocation5 + $0x340] sm:$0xff]
    %v382 = vld [vmem:[#allocation5 + $0x348] sm:$0xff]
    %v383 = vld [vmem:[#allocation5 + $0x350] sm:$0xff]
    %v384 = vld [vmem:[#allocation5 + $0x358] sm:$0xff]
    %v385 = vld [vmem:[#allocation5 + $0x360] sm:$0xff]
    %v386 = vld [vmem:[#allocation5 + $0x368] sm:$0xff]
    %v387 = vld [vmem:[#allocation5 + $0x370] sm:$0xff]
    %v388 = vld [vmem:[#allocation5 + $0x378] sm:$0xff]
    %v389 = vld [vmem:[#allocation5 + $0x380] sm:$0xff]
    %v390 = vld [vmem:[#allocation5 + $0x388] sm:$0xff]
    %v391 = vld [vmem:[#allocation5 + $0x390] sm:$0xff]
    %v392 = vld [vmem:[#allocation5 + $0x398] sm:$0xff]
    %v393 = vld [vmem:[#allocation5 + $0x3a0] sm:$0xff]
    %v394 = vld [vmem:[#allocation5 + $0x3a8] sm:$0xff]
    %v395 = vld [vmem:[#allocation5 + $0x3b0] sm:$0xff]
    %v396 = vld [vmem:[#allocation5 + $0x3b8] sm:$0xff]
    %v397 = vld [vmem:[#allocation5 + $0x3c0] sm:$0xff]
    %v398 = vld [vmem:[#allocation5 + $0x3c8] sm:$0xff]
    %v399 = vld [vmem:[#allocation5 + $0x3d0] sm:$0xff]
    %v400 = vld [vmem:[#allocation5 + $0x3d8] sm:$0xff]
    %v401 = vld [vmem:[#allocation5 + $0x3e0] sm:$0xff]
    %v402 = vld [vmem:[#allocation5 + $0x3e8] sm:$0xff]
    %v403 = vld [vmem:[#allocation5 + $0x3f0] sm:$0xff]
    %v404 = vld [vmem:[#allocation5 + $0x3f8] sm:$0xff]
    %v405 = vld [vmem:[#allocation5 + $0x400] sm:$0xff]
    %v406 = vld [vmem:[#allocation5 + $0x408] sm:$0xff]
    %v407 = vld [vmem:[#allocation5 + $0x410] sm:$0xff]
    %v408 = vld [vmem:[#allocation5 + $0x418] sm:$0xff]
    %v409 = vld [vmem:[#allocation5 + $0x420] sm:$0xff]
    %v410 = vld [vmem:[#allocation5 + $0x428] sm:$0xff]
    %v411 = vld [vmem:[#allocation5 + $0x430] sm:$0xff]
    %v412 = vld [vmem:[#allocation5 + $0x438] sm:$0xff]
    %v413 = vld [vmem:[#allocation5 + $0x440] sm:$0xff]
    %v414 = vld [vmem:[#allocation5 + $0x448] sm:$0xff]
    %v415 = vld [vmem:[#allocation5 + $0x450] sm:$0xff]
    %v416 = vld [vmem:[#allocation5 + $0x458] sm:$0xff]
    %v417 = vld [vmem:[#allocation5 + $0x460] sm:$0xff]
    %v418 = vld [vmem:[#allocation5 + $0x468] sm:$0xff]
    %v419 = vld [vmem:[#allocation5 + $0x470] sm:$0xff]
    %v420 = vld [vmem:[#allocation5 + $0x478] sm:$0xff]
    %v421 = vld [vmem:[#allocation5 + $0x480] sm:$0xff]
    %v422 = vld [vmem:[#allocation5 + $0x488] sm:$0xff]
    %v423 = vld [vmem:[#allocation5 + $0x490] sm:$0xff]
    %v424 = vld [vmem:[#allocation5 + $0x498] sm:$0xff]
    %v425 = vld [vmem:[#allocation5 + $0x4a0] sm:$0xff]
    %v426 = vld [vmem:[#allocation5 + $0x4a8] sm:$0xff]
    %v427 = vld [vmem:[#allocation5 + $0x4b0] sm:$0xff]
    %v428 = vld [vmem:[#allocation5 + $0x4b8] sm:$0xff]
    %v429 = vld [vmem:[#allocation5 + $0x4c0] sm:$0xff]
    %v430 = vld [vmem:[#allocation5 + $0x4c8] sm:$0xff]
    %v431 = vld [vmem:[#allocation5 + $0x4d0] sm:$0xff]
    %v432 = vld [vmem:[#allocation5 + $0x4d8] sm:$0xff]
    %v433 = vld [vmem:[#allocation5 + $0x4e0] sm:$0xff]
    %v434 = vld [vmem:[#allocation5 + $0x4e8] sm:$0xff]
    %v435 = vld [vmem:[#allocation5 + $0x4f0] sm:$0xff]
    %v436 = vld [vmem:[#allocation5 + $0x4f8] sm:$0xff]
    %v437 = vld [vmem:[#allocation5 + $0x500] sm:$0xff]
    %v438 = vld [vmem:[#allocation5 + $0x508] sm:$0xff]
    %v439 = vld [vmem:[#allocation5 + $0x510] sm:$0xff]
    %v440 = vld [vmem:[#allocation5 + $0x518] sm:$0xff]
    %v441 = vld [vmem:[#allocation5 + $0x520] sm:$0xff]
    %v442 = vld [vmem:[#allocation5 + $0x528] sm:$0xff]
    %v443 = vld [vmem:[#allocation5 + $0x530] sm:$0xff]
    %v444 = vld [vmem:[#allocation5 + $0x538] sm:$0xff]
    %v445 = vld [vmem:[#allocation5 + $0x540] sm:$0xff]
    %v446 = vld [vmem:[#allocation5 + $0x548] sm:$0xff]
    %v447 = vld [vmem:[#allocation5 + $0x550] sm:$0xff]
    %v448 = vld [vmem:[#allocation5 + $0x558] sm:$0xff]
    %v449 = vld [vmem:[#allocation5 + $0x560] sm:$0xff]
    %v450 = vld [vmem:[#allocation5 + $0x568] sm:$0xff]
    %v451 = vld [vmem:[#allocation5 + $0x570] sm:$0xff]
    %v452 = vld [vmem:[#allocation5 + $0x578] sm:$0xff]
    %v453 = vld [vmem:[#allocation5 + $0x580] sm:$0xff]
    %v454 = vld [vmem:[#allocation5 + $0x588] sm:$0xff]
    %v455 = vld [vmem:[#allocation5 + $0x590] sm:$0xff]
    %v456 = vld [vmem:[#allocation5 + $0x598] sm:$0xff]
    %v457 = vld [vmem:[#allocation5 + $0x5a0] sm:$0xff]
    %v458 = vld [vmem:[#allocation5 + $0x5a8] sm:$0xff]
    %v459 = vld [vmem:[#allocation5 + $0x5b0] sm:$0xff]
    %v460 = vld [vmem:[#allocation5 + $0x5b8] sm:$0xff]
    %v461 = vld [vmem:[#allocation5 + $0x5c0] sm:$0xff]
    %v462 = vld [vmem:[#allocation5 + $0x5c8] sm:$0xff]
    %v463 = vld [vmem:[#allocation5 + $0x5d0] sm:$0xff]
    %v464 = vld [vmem:[#allocation5 + $0x5d8] sm:$0xff]
    %v465 = vld [vmem:[#allocation5 + $0x5e0] sm:$0xff]
    %v466 = vld [vmem:[#allocation5 + $0x5e8] sm:$0xff]
    %v467 = vld [vmem:[#allocation5 + $0x5f0] sm:$0xff]
    %v468 = vld [vmem:[#allocation5 + $0x5f8] sm:$0xff]
    %v469 = vld [vmem:[#allocation5 + $0x600] sm:$0xff]
    %v470 = vld [vmem:[#allocation5 + $0x608] sm:$0xff]
    %v471 = vld [vmem:[#allocation5 + $0x610] sm:$0xff]
    %v472 = vld [vmem:[#allocation5 + $0x618] sm:$0xff]
    %v473 = vld [vmem:[#allocation5 + $0x620] sm:$0xff]
    %v474 = vld [vmem:[#allocation5 + $0x628] sm:$0xff]
    %v475 = vld [vmem:[#allocation5 + $0x630] sm:$0xff]
    %v476 = vld [vmem:[#allocation5 + $0x638] sm:$0xff]
    %v477 = vld [vmem:[#allocation5 + $0x640] sm:$0xff]
    %v478 = vld [vmem:[#allocation5 + $0x648] sm:$0xff]
    %v479 = vld [vmem:[#allocation5 + $0x650] sm:$0xff]
    %v480 = vld [vmem:[#allocation5 + $0x658] sm:$0xff]
    %v481 = vld [vmem:[#allocation5 + $0x660] sm:$0xff]
    %v482 = vld [vmem:[#allocation5 + $0x668] sm:$0xff]
    %v483 = vld [vmem:[#allocation5 + $0x670] sm:$0xff]
    %v484 = vld [vmem:[#allocation5 + $0x678] sm:$0xff]
    %v485 = vld [vmem:[#allocation5 + $0x680] sm:$0xff]
    %v486 = vld [vmem:[#allocation5 + $0x688] sm:$0xff]
    %v487 = vld [vmem:[#allocation5 + $0x690] sm:$0xff]
    %v488 = vld [vmem:[#allocation5 + $0x698] sm:$0xff]
    %v489 = vld [vmem:[#allocation5 + $0x6a0] sm:$0xff]
    %v490 = vld [vmem:[#allocation5 + $0x6a8] sm:$0xff]
    %v491 = vld [vmem:[#allocation5 + $0x6b0] sm:$0xff]
    %v492 = vld [vmem:[#allocation5 + $0x6b8] sm:$0xff]
    %v493 = vld [vmem:[#allocation5 + $0x6c0] sm:$0xff]
    %v494 = vld [vmem:[#allocation5 + $0x6c8] sm:$0xff]
    %v495 = vld [vmem:[#allocation5 + $0x6d0] sm:$0xff]
    %v496 = vld [vmem:[#allocation5 + $0x6d8] sm:$0xff]
    %v497 = vld [vmem:[#allocation5 + $0x6e0] sm:$0xff]
    %v498 = vld [vmem:[#allocation5 + $0x6e8] sm:$0xff]
    %v499 = vld [vmem:[#allocation5 + $0x6f0] sm:$0xff]
    %v500 = vld [vmem:[#allocation5 + $0x6f8] sm:$0xff]
    %v501 = vld [vmem:[#allocation5 + $0x700] sm:$0xff]
    %v502 = vld [vmem:[#allocation5 + $0x708] sm:$0xff]
    %v503 = vld [vmem:[#allocation5 + $0x710] sm:$0xff]
    %v504 = vld [vmem:[#allocation5 + $0x718] sm:$0xff]
    %v505 = vld [vmem:[#allocation5 + $0x720] sm:$0xff]
    %v506 = vld [vmem:[#allocation5 + $0x728] sm:$0xff]
    %v507 = vld [vmem:[#allocation5 + $0x730] sm:$0xff]
    %v508 = vld [vmem:[#allocation5 + $0x738] sm:$0xff]
    %v509 = vld [vmem:[#allocation5 + $0x740] sm:$0xff]
    %v510 = vld [vmem:[#allocation5 + $0x748] sm:$0xff]
    %v511 = vld [vmem:[#allocation5 + $0x750] sm:$0xff]
    %v512 = vld [vmem:[#allocation5 + $0x758] sm:$0xff]
    %v513 = vld [vmem:[#allocation5 + $0x760] sm:$0xff]
    %v514 = vld [vmem:[#allocation5 + $0x768] sm:$0xff]
    %v515 = vld [vmem:[#allocation5 + $0x770] sm:$0xff]
    %v516 = vld [vmem:[#allocation5 + $0x778] sm:$0xff]
    %v517 = vld [vmem:[#allocation5 + $0x780] sm:$0xff]
    %v518 = vld [vmem:[#allocation5 + $0x788] sm:$0xff]
    %v519 = vld [vmem:[#allocation5 + $0x790] sm:$0xff]
    %v520 = vld [vmem:[#allocation5 + $0x798] sm:$0xff]
    %v521 = vld [vmem:[#allocation5 + $0x7a0] sm:$0xff]
    %v522 = vld [vmem:[#allocation5 + $0x7a8] sm:$0xff]
    %v523 = vld [vmem:[#allocation5 + $0x7b0] sm:$0xff]
    %v524 = vld [vmem:[#allocation5 + $0x7b8] sm:$0xff]
    %v525 = vld [vmem:[#allocation5 + $0x7c0] sm:$0xff]
    %v526 = vld [vmem:[#allocation5 + $0x7c8] sm:$0xff]
    %v527 = vld [vmem:[#allocation5 + $0x7d0] sm:$0xff]
    %v528 = vld [vmem:[#allocation5 + $0x7d8] sm:$0xff]
    %v529 = vld [vmem:[#allocation5 + $0x7e0] sm:$0xff]
    %v530 = vld [vmem:[#allocation5 + $0x7e8] sm:$0xff]
    %v531 = vld [vmem:[#allocation5 + $0x7f0] sm:$0xff]
    %v532 = vld [vmem:[#allocation5 + $0x7f8] sm:$0xff]
    %v533 = vld [vmem:[#allocation5 + $0x800] sm:$0xff]
    %v534 = vld [vmem:[#allocation5 + $0x808] sm:$0xff]
    %v535 = vld [vmem:[#allocation5 + $0x810] sm:$0xff]
    %v536 = vld [vmem:[#allocation5 + $0x818] sm:$0xff]
    %v537 = vld [vmem:[#allocation5 + $0x820] sm:$0xff]
    %v538 = vld [vmem:[#allocation5 + $0x828] sm:$0xff]
    %v539 = vld [vmem:[#allocation5 + $0x830] sm:$0xff]
    %v540 = vld [vmem:[#allocation5 + $0x838] sm:$0xff]
    %v541 = vld [vmem:[#allocation5 + $0x840] sm:$0xff]
    %v542 = vld [vmem:[#allocation5 + $0x848] sm:$0xff]
    %v543 = vld [vmem:[#allocation5 + $0x850] sm:$0xff]
    %v544 = vld [vmem:[#allocation5 + $0x858] sm:$0xff]
    %v545 = vld [vmem:[#allocation5 + $0x860] sm:$0xff]
    %v546 = vld [vmem:[#allocation5 + $0x868] sm:$0xff]
    %v547 = vld [vmem:[#allocation5 + $0x870] sm:$0xff]
    %v548 = vld [vmem:[#allocation5 + $0x878] sm:$0xff]
    %v549 = vld [vmem:[#allocation5 + $0x880] sm:$0xff]
    %v550 = vld [vmem:[#allocation5 + $0x888] sm:$0xff]
    %v551 = vld [vmem:[#allocation5 + $0x890] sm:$0xff]
    %v552 = vld [vmem:[#allocation5 + $0x898] sm:$0xff]
    %v553 = vld [vmem:[#allocation5 + $0x8a0] sm:$0xff]
    %v554 = vld [vmem:[#allocation5 + $0x8a8] sm:$0xff]
    %v555 = vld [vmem:[#allocation5 + $0x8b0] sm:$0xff]
    %v556 = vld [vmem:[#allocation5 + $0x8b8] sm:$0xff]
    %v557 = vld [vmem:[#allocation5 + $0x8c0] sm:$0xff]
    %v558 = vld [vmem:[#allocation5 + $0x8c8] sm:$0xff]
    %v559 = vld [vmem:[#allocation5 + $0x8d0] sm:$0xff]
    %v560 = vld [vmem:[#allocation5 + $0x8d8] sm:$0xff]
    %v561 = vld [vmem:[#allocation5 + $0x8e0] sm:$0xff]
    %v562 = vld [vmem:[#allocation5 + $0x8e8] sm:$0xff]
    %v563 = vld [vmem:[#allocation5 + $0x8f0] sm:$0xff]
    %v564 = vld [vmem:[#allocation5 + $0x8f8] sm:$0xff]
    %v565 = vld [vmem:[#allocation5 + $0x900] sm:$0xff]
    %v566 = vld [vmem:[#allocation5 + $0x908] sm:$0xff]
    %v567 = vld [vmem:[#allocation5 + $0x910] sm:$0xff]
    %v568 = vld [vmem:[#allocation5 + $0x918] sm:$0xff]
    %v569 = vld [vmem:[#allocation5 + $0x920] sm:$0xff]
    %v570 = vld [vmem:[#allocation5 + $0x928] sm:$0xff]
    %v571 = vld [vmem:[#allocation5 + $0x930] sm:$0xff]
    %v572 = vld [vmem:[#allocation5 + $0x938] sm:$0xff]
    %v573 = vld [vmem:[#allocation5 + $0x940] sm:$0xff]
    %v574 = vld [vmem:[#allocation5 + $0x948] sm:$0xff]
    %v575 = vld [vmem:[#allocation5 + $0x950] sm:$0xff]
    %v576 = vld [vmem:[#allocation5 + $0x958] sm:$0xff]
    %v577 = vld [vmem:[#allocation5 + $0x960] sm:$0xff]
    %v578 = vld [vmem:[#allocation5 + $0x968] sm:$0xff]
    %v579 = vld [vmem:[#allocation5 + $0x970] sm:$0xff]
    %v580 = vld [vmem:[#allocation5 + $0x978] sm:$0xff]
    %v581 = vld [vmem:[#allocation5 + $0x980] sm:$0xff]
    %v582 = vld [vmem:[#allocation5 + $0x988] sm:$0xff]
    %v583 = vld [vmem:[#allocation5 + $0x990] sm:$0xff]
    %v584 = vld [vmem:[#allocation5 + $0x998] sm:$0xff]
    %v585 = vld [vmem:[#allocation5 + $0x9a0] sm:$0xff]
    %v586 = vld [vmem:[#allocation5 + $0x9a8] sm:$0xff]
    %v587 = vld [vmem:[#allocation5 + $0x9b0] sm:$0xff]
    %v588 = vld [vmem:[#allocation5 + $0x9b8] sm:$0xff]
    %v589 = vld [vmem:[#allocation5 + $0x9c0] sm:$0xff]
    %v590 = vld [vmem:[#allocation5 + $0x9c8] sm:$0xff]
    %v591 = vld [vmem:[#allocation5 + $0x9d0] sm:$0xff]
    %v592 = vld [vmem:[#allocation5 + $0x9d8] sm:$0xff]
    %v593 = vld [vmem:[#allocation5 + $0x9e0] sm:$0xff]
    %v594 = vld [vmem:[#allocation5 + $0x9e8] sm:$0xff]
    %v595 = vld [vmem:[#allocation5 + $0x9f0] sm:$0xff]
    %v596 = vld [vmem:[#allocation5 + $0x9f8] sm:$0xff]
    %v597 = vld [vmem:[#allocation5 + $0xa00] sm:$0xff]
    %v598 = vld [vmem:[#allocation5 + $0xa08] sm:$0xff]
    %v599 = vld [vmem:[#allocation5 + $0xa10] sm:$0xff]
    %v600 = vld [vmem:[#allocation5 + $0xa18] sm:$0xff]
    %v601 = vld [vmem:[#allocation5 + $0xa20] sm:$0xff]
    %v602 = vld [vmem:[#allocation5 + $0xa28] sm:$0xff]
    %v603 = vld [vmem:[#allocation5 + $0xa30] sm:$0xff]
    %v604 = vld [vmem:[#allocation5 + $0xa38] sm:$0xff]
    %v605 = vld [vmem:[#allocation5 + $0xa40] sm:$0xff]
    %v606 = vld [vmem:[#allocation5 + $0xa48] sm:$0xff]
    %v607 = vld [vmem:[#allocation5 + $0xa50] sm:$0xff]
    %v608 = vld [vmem:[#allocation5 + $0xa58] sm:$0xff]
    %v609 = vld [vmem:[#allocation5 + $0xa60] sm:$0xff]
    %v610 = vld [vmem:[#allocation5 + $0xa68] sm:$0xff]
    %v611 = vld [vmem:[#allocation5 + $0xa70] sm:$0xff]
    %v612 = vld [vmem:[#allocation5 + $0xa78] sm:$0xff]
    %v613 = vld [vmem:[#allocation5 + $0xa80] sm:$0xff]
    %v614 = vld [vmem:[#allocation5 + $0xa88] sm:$0xff]
    %v615 = vld [vmem:[#allocation5 + $0xa90] sm:$0xff]
    %v616 = vld [vmem:[#allocation5 + $0xa98] sm:$0xff]
    %v617 = vld [vmem:[#allocation5 + $0xaa0] sm:$0xff]
    %v618 = vld [vmem:[#allocation5 + $0xaa8] sm:$0xff]
    %v619 = vld [vmem:[#allocation5 + $0xab0] sm:$0xff]
    %v620 = vld [vmem:[#allocation5 + $0xab8] sm:$0xff]
    %v621 = vld [vmem:[#allocation5 + $0xac0] sm:$0xff]
    %v622 = vld [vmem:[#allocation5 + $0xac8] sm:$0xff]
    %v623 = vld [vmem:[#allocation5 + $0xad0] sm:$0xff]
    %v624 = vld [vmem:[#allocation5 + $0xad8] sm:$0xff]
    %v625 = vld [vmem:[#allocation5 + $0xae0] sm:$0xff]
    %v626 = vld [vmem:[#allocation5 + $0xae8] sm:$0xff]
    %v627 = vld [vmem:[#allocation5 + $0xaf0] sm:$0xff]
    %v628 = vld [vmem:[#allocation5 + $0xaf8] sm:$0xff]
    %v629 = vld [vmem:[#allocation5 + $0xb00] sm:$0xff]
    %v630 = vld [vmem:[#allocation5 + $0xb08] sm:$0xff]
    %v631 = vld [vmem:[#allocation5 + $0xb10] sm:$0xff]
    %v632 = vld [vmem:[#allocation5 + $0xb18] sm:$0xff]
    %v633 = vld [vmem:[#allocation5 + $0xb20] sm:$0xff]
    %v634 = vld [vmem:[#allocation5 + $0xb28] sm:$0xff]
    %v635 = vld [vmem:[#allocation5 + $0xb30] sm:$0xff]
    %v636 = vld [vmem:[#allocation5 + $0xb38] sm:$0xff]
    %v637 = vld [vmem:[#allocation5 + $0xb40] sm:$0xff]
    %v638 = vld [vmem:[#allocation5 + $0xb48] sm:$0xff]
    %v639 = vld [vmem:[#allocation5 + $0xb50] sm:$0xff]
    %v640 = vld [vmem:[#allocation5 + $0xb58] sm:$0xff]
    %v641 = vld [vmem:[#allocation5 + $0xb60] sm:$0xff]
    %v642 = vld [vmem:[#allocation5 + $0xb68] sm:$0xff]
    %v643 = vld [vmem:[#allocation5 + $0xb70] sm:$0xff]
    %v644 = vld [vmem:[#allocation5 + $0xb78] sm:$0xff]
    %v645 = vld [vmem:[#allocation5 + $0xb80] sm:$0xff]
    %v646 = vld [vmem:[#allocation5 + $0xb88] sm:$0xff]
    %v647 = vld [vmem:[#allocation5 + $0xb90] sm:$0xff]
    %v648 = vld [vmem:[#allocation5 + $0xb98] sm:$0xff]
    %v649 = vld [vmem:[#allocation5 + $0xba0] sm:$0xff]
    %v650 = vld [vmem:[#allocation5 + $0xba8] sm:$0xff]
    %v651 = vld [vmem:[#allocation5 + $0xbb0] sm:$0xff]
    %v652 = vld [vmem:[#allocation5 + $0xbb8] sm:$0xff]
    %v653 = vld [vmem:[#allocation5 + $0xbc0] sm:$0xff]
    %v654 = vld [vmem:[#allocation5 + $0xbc8] sm:$0xff]
    %v655 = vld [vmem:[#allocation5 + $0xbd0] sm:$0xff]
    %v656 = vld [vmem:[#allocation5 + $0xbd8] sm:$0xff]
    %v657 = vld [vmem:[#allocation5 + $0xbe0] sm:$0xff]
    %v658 = vld [vmem:[#allocation5 + $0xbe8] sm:$0xff]
    %v659 = vld [vmem:[#allocation5 + $0xbf0] sm:$0xff]
    %v660 = vld [vmem:[#allocation5 + $0xbf8] sm:$0xff]
    %v661 = vld [vmem:[#allocation7] sm:$0x3]
    %v663 = vlaneseq
    %v664 = vshrl.u32 %v663, 7
    %v665 = vsub.s32 0, %v664
    %v666 = vrot.slane %v661, %v665
    %v667 = vlaneseq
    %v668 = vshrl.u32 %v667, 7
    %v669 = vsub.s32 1, %v668
    %v670 = vrot.slane %v661, %v669
    %v1057 = vunpack.c.l.b16 %v277
    %v1058 = vunpack.c.h.b16 %v277
    %v1059 = vunpack.c.l.b16 %v278
    %v1060 = vunpack.c.h.b16 %v278
    %v1061 = vunpack.c.l.b16 %v279
    %v1062 = vunpack.c.h.b16 %v279
    %v1063 = vunpack.c.l.b16 %v280
    %v1064 = vunpack.c.h.b16 %v280
    %v1065 = vunpack.c.l.b16 %v281
    %v1066 = vunpack.c.h.b16 %v281
    %v1067 = vunpack.c.l.b16 %v282
    %v1068 = vunpack.c.h.b16 %v282
    %v1069 = vunpack.c.l.b16 %v283
    %v1070 = vunpack.c.h.b16 %v283
    %v1071 = vunpack.c.l.b16 %v284
    %v1072 = vunpack.c.h.b16 %v284
    %v1073 = vunpack.c.l.b16 %v285
    %v1074 = vunpack.c.h.b16 %v285
    %v1075 = vunpack.c.l.b16 %v286
    %v1076 = vunpack.c.h.b16 %v286
    %v1077 = vunpack.c.l.b16 %v287
    %v1078 = vunpack.c.h.b16 %v287
    %v1079 = vunpack.c.l.b16 %v288
    %v1080 = vunpack.c.h.b16 %v288
    %v1081 = vunpack.c.l.b16 %v289
    %v1082 = vunpack.c.h.b16 %v289
    %v1083 = vunpack.c.l.b16 %v290
    %v1084 = vunpack.c.h.b16 %v290
    %v1085 = vunpack.c.l.b16 %v291
    %v1086 = vunpack.c.h.b16 %v291
    %v1087 = vunpack.c.l.b16 %v292
    %v1088 = vunpack.c.h.b16 %v292
    %v1089 = vunpack.c.l.b16 %v293
    %v1090 = vunpack.c.h.b16 %v293
    %v1091 = vunpack.c.l.b16 %v294
    %v1092 = vunpack.c.h.b16 %v294
    %v1093 = vunpack.c.l.b16 %v295
    %v1094 = vunpack.c.h.b16 %v295
    %v1095 = vunpack.c.l.b16 %v296
    %v1096 = vunpack.c.h.b16 %v296
    %v1097 = vunpack.c.l.b16 %v297
    %v1098 = vunpack.c.h.b16 %v297
    %v1099 = vunpack.c.l.b16 %v298
    %v1100 = vunpack.c.h.b16 %v298
    %v1101 = vunpack.c.l.b16 %v299
    %v1102 = vunpack.c.h.b16 %v299
    %v1103 = vunpack.c.l.b16 %v300
    %v1104 = vunpack.c.h.b16 %v300
    %v1105 = vunpack.c.l.b16 %v301
    %v1106 = vunpack.c.h.b16 %v301
    %v1107 = vunpack.c.l.b16 %v302
    %v1108 = vunpack.c.h.b16 %v302
    %v1109 = vunpack.c.l.b16 %v303
    %v1110 = vunpack.c.h.b16 %v303
    %v1111 = vunpack.c.l.b16 %v304
    %v1112 = vunpack.c.h.b16 %v304
    %v1113 = vunpack.c.l.b16 %v305
    %v1114 = vunpack.c.h.b16 %v305
    %v1115 = vunpack.c.l.b16 %v306
    %v1116 = vunpack.c.h.b16 %v306
    %v1117 = vunpack.c.l.b16 %v307
    %v1118 = vunpack.c.h.b16 %v307
    %v1119 = vunpack.c.l.b16 %v308
    %v1120 = vunpack.c.h.b16 %v308
    %v1121 = vunpack.c.l.b16 %v309
    %v1122 = vunpack.c.h.b16 %v309
    %v1123 = vunpack.c.l.b16 %v310
    %v1124 = vunpack.c.h.b16 %v310
    %v1125 = vunpack.c.l.b16 %v311
    %v1126 = vunpack.c.h.b16 %v311
    %v1127 = vunpack.c.l.b16 %v312
    %v1128 = vunpack.c.h.b16 %v312
    %v1129 = vunpack.c.l.b16 %v313
    %v1130 = vunpack.c.h.b16 %v313
    %v1131 = vunpack.c.l.b16 %v314
    %v1132 = vunpack.c.h.b16 %v314
    %v1133 = vunpack.c.l.b16 %v315
    %v1134 = vunpack.c.h.b16 %v315
    %v1135 = vunpack.c.l.b16 %v316
    %v1136 = vunpack.c.h.b16 %v316
    %v1137 = vunpack.c.l.b16 %v317
    %v1138 = vunpack.c.h.b16 %v317
    %v1139 = vunpack.c.l.b16 %v318
    %v1140 = vunpack.c.h.b16 %v318
    %v1141 = vunpack.c.l.b16 %v319
    %v1142 = vunpack.c.h.b16 %v319
    %v1143 = vunpack.c.l.b16 %v320
    %v1144 = vunpack.c.h.b16 %v320
    %v1145 = vunpack.c.l.b16 %v321
    %v1146 = vunpack.c.h.b16 %v321
    %v1147 = vunpack.c.l.b16 %v322
    %v1148 = vunpack.c.h.b16 %v322
    %v1149 = vunpack.c.l.b16 %v323
    %v1150 = vunpack.c.h.b16 %v323
    %v1151 = vunpack.c.l.b16 %v324
    %v1152 = vunpack.c.h.b16 %v324
    %v1153 = vunpack.c.l.b16 %v325
    %v1154 = vunpack.c.h.b16 %v325
    %v1155 = vunpack.c.l.b16 %v326
    %v1156 = vunpack.c.h.b16 %v326
    %v1157 = vunpack.c.l.b16 %v327
    %v1158 = vunpack.c.h.b16 %v327
    %v1159 = vunpack.c.l.b16 %v328
    %v1160 = vunpack.c.h.b16 %v328
    %v1161 = vunpack.c.l.b16 %v329
    %v1162 = vunpack.c.h.b16 %v329
    %v1163 = vunpack.c.l.b16 %v330
    %v1164 = vunpack.c.h.b16 %v330
    %v1165 = vunpack.c.l.b16 %v331
    %v1166 = vunpack.c.h.b16 %v331
    %v1167 = vunpack.c.l.b16 %v332
    %v1168 = vunpack.c.h.b16 %v332
    %v1169 = vunpack.c.l.b16 %v333
    %v1170 = vunpack.c.h.b16 %v333
    %v1171 = vunpack.c.l.b16 %v334
    %v1172 = vunpack.c.h.b16 %v334
    %v1173 = vunpack.c.l.b16 %v335
    %v1174 = vunpack.c.h.b16 %v335
    %v1175 = vunpack.c.l.b16 %v336
    %v1176 = vunpack.c.h.b16 %v336
    %v1177 = vunpack.c.l.b16 %v337
    %v1178 = vunpack.c.h.b16 %v337
    %v1179 = vunpack.c.l.b16 %v338
    %v1180 = vunpack.c.h.b16 %v338
    %v1181 = vunpack.c.l.b16 %v339
    %v1182 = vunpack.c.h.b16 %v339
    %v1183 = vunpack.c.l.b16 %v340
    %v1184 = vunpack.c.h.b16 %v340
    %v1185 = vunpack.c.l.b16 %v341
    %v1186 = vunpack.c.h.b16 %v341
    %v1187 = vunpack.c.l.b16 %v342
    %v1188 = vunpack.c.h.b16 %v342
    %v1189 = vunpack.c.l.b16 %v343
    %v1190 = vunpack.c.h.b16 %v343
    %v1191 = vunpack.c.l.b16 %v344
    %v1192 = vunpack.c.h.b16 %v344
    %v1193 = vunpack.c.l.b16 %v345
    %v1194 = vunpack.c.h.b16 %v345
    %v1195 = vunpack.c.l.b16 %v346
    %v1196 = vunpack.c.h.b16 %v346
    %v1197 = vunpack.c.l.b16 %v347
    %v1198 = vunpack.c.h.b16 %v347
    %v1199 = vunpack.c.l.b16 %v348
    %v1200 = vunpack.c.h.b16 %v348
    %v1201 = vunpack.c.l.b16 %v349
    %v1202 = vunpack.c.h.b16 %v349
    %v1203 = vunpack.c.l.b16 %v350
    %v1204 = vunpack.c.h.b16 %v350
    %v1205 = vunpack.c.l.b16 %v351
    %v1206 = vunpack.c.h.b16 %v351
    %v1207 = vunpack.c.l.b16 %v352
    %v1208 = vunpack.c.h.b16 %v352
    %v1209 = vunpack.c.l.b16 %v353
    %v1210 = vunpack.c.h.b16 %v353
    %v1211 = vunpack.c.l.b16 %v354
    %v1212 = vunpack.c.h.b16 %v354
    %v1213 = vunpack.c.l.b16 %v355
    %v1214 = vunpack.c.h.b16 %v355
    %v1215 = vunpack.c.l.b16 %v356
    %v1216 = vunpack.c.h.b16 %v356
    %v1217 = vunpack.c.l.b16 %v357
    %v1218 = vunpack.c.h.b16 %v357
    %v1219 = vunpack.c.l.b16 %v358
    %v1220 = vunpack.c.h.b16 %v358
    %v1221 = vunpack.c.l.b16 %v359
    %v1222 = vunpack.c.h.b16 %v359
    %v1223 = vunpack.c.l.b16 %v360
    %v1224 = vunpack.c.h.b16 %v360
    %v1225 = vunpack.c.l.b16 %v361
    %v1226 = vunpack.c.h.b16 %v361
    %v1227 = vunpack.c.l.b16 %v362
    %v1228 = vunpack.c.h.b16 %v362
    %v1229 = vunpack.c.l.b16 %v363
    %v1230 = vunpack.c.h.b16 %v363
    %v1231 = vunpack.c.l.b16 %v364
    %v1232 = vunpack.c.h.b16 %v364
    %v1233 = vunpack.c.l.b16 %v365
    %v1234 = vunpack.c.h.b16 %v365
    %v1235 = vunpack.c.l.b16 %v366
    %v1236 = vunpack.c.h.b16 %v366
    %v1237 = vunpack.c.l.b16 %v367
    %v1238 = vunpack.c.h.b16 %v367
    %v1239 = vunpack.c.l.b16 %v368
    %v1240 = vunpack.c.h.b16 %v368
    %v1241 = vunpack.c.l.b16 %v369
    %v1242 = vunpack.c.h.b16 %v369
    %v1243 = vunpack.c.l.b16 %v370
    %v1244 = vunpack.c.h.b16 %v370
    %v1245 = vunpack.c.l.b16 %v371
    %v1246 = vunpack.c.h.b16 %v371
    %v1247 = vunpack.c.l.b16 %v372
    %v1248 = vunpack.c.h.b16 %v372
    %v1249 = vunpack.c.l.b16 %v373
    %v1250 = vunpack.c.h.b16 %v373
    %v1251 = vunpack.c.l.b16 %v374
    %v1252 = vunpack.c.h.b16 %v374
    %v1253 = vunpack.c.l.b16 %v375
    %v1254 = vunpack.c.h.b16 %v375
    %v1255 = vunpack.c.l.b16 %v376
    %v1256 = vunpack.c.h.b16 %v376
    %v1257 = vunpack.c.l.b16 %v377
    %v1258 = vunpack.c.h.b16 %v377
    %v1259 = vunpack.c.l.b16 %v378
    %v1260 = vunpack.c.h.b16 %v378
    %v1261 = vunpack.c.l.b16 %v379
    %v1262 = vunpack.c.h.b16 %v379
    %v1263 = vunpack.c.l.b16 %v380
    %v1264 = vunpack.c.h.b16 %v380
    %v1265 = vunpack.c.l.b16 %v381
    %v1266 = vunpack.c.h.b16 %v381
    %v1267 = vunpack.c.l.b16 %v382
    %v1268 = vunpack.c.h.b16 %v382
    %v1269 = vunpack.c.l.b16 %v383
    %v1270 = vunpack.c.h.b16 %v383
    %v1271 = vunpack.c.l.b16 %v384
    %v1272 = vunpack.c.h.b16 %v384
    %v1273 = vunpack.c.l.b16 %v385
    %v1274 = vunpack.c.h.b16 %v385
    %v1275 = vunpack.c.l.b16 %v386
    %v1276 = vunpack.c.h.b16 %v386
    %v1277 = vunpack.c.l.b16 %v387
    %v1278 = vunpack.c.h.b16 %v387
    %v1279 = vunpack.c.l.b16 %v388
    %v1280 = vunpack.c.h.b16 %v388
    %v1281 = vunpack.c.l.b16 %v389
    %v1282 = vunpack.c.h.b16 %v389
    %v1283 = vunpack.c.l.b16 %v390
    %v1284 = vunpack.c.h.b16 %v390
    %v1285 = vunpack.c.l.b16 %v391
    %v1286 = vunpack.c.h.b16 %v391
    %v1287 = vunpack.c.l.b16 %v392
    %v1288 = vunpack.c.h.b16 %v392
    %v1289 = vunpack.c.l.b16 %v393
    %v1290 = vunpack.c.h.b16 %v393
    %v1291 = vunpack.c.l.b16 %v394
    %v1292 = vunpack.c.h.b16 %v394
    %v1293 = vunpack.c.l.b16 %v395
    %v1294 = vunpack.c.h.b16 %v395
    %v1295 = vunpack.c.l.b16 %v396
    %v1296 = vunpack.c.h.b16 %v396
    %v1297 = vunpack.c.l.b16 %v397
    %v1298 = vunpack.c.h.b16 %v397
    %v1299 = vunpack.c.l.b16 %v398
    %v1300 = vunpack.c.h.b16 %v398
    %v1301 = vunpack.c.l.b16 %v399
    %v1302 = vunpack.c.h.b16 %v399
    %v1303 = vunpack.c.l.b16 %v400
    %v1304 = vunpack.c.h.b16 %v400
    %v1305 = vunpack.c.l.b16 %v401
    %v1306 = vunpack.c.h.b16 %v401
    %v1307 = vunpack.c.l.b16 %v402
    %v1308 = vunpack.c.h.b16 %v402
    %v1309 = vunpack.c.l.b16 %v403
    %v1310 = vunpack.c.h.b16 %v403
    %v1311 = vunpack.c.l.b16 %v404
    %v1312 = vunpack.c.h.b16 %v404
    %v1313 = vunpack.c.l.b16 %v405
    %v1314 = vunpack.c.h.b16 %v405
    %v1315 = vunpack.c.l.b16 %v406
    %v1316 = vunpack.c.h.b16 %v406
    %v1317 = vunpack.c.l.b16 %v407
    %v1318 = vunpack.c.h.b16 %v407
    %v1319 = vunpack.c.l.b16 %v408
    %v1320 = vunpack.c.h.b16 %v408
    %v1321 = vunpack.c.l.b16 %v409
    %v1322 = vunpack.c.h.b16 %v409
    %v1323 = vunpack.c.l.b16 %v410
    %v1324 = vunpack.c.h.b16 %v410
    %v1325 = vunpack.c.l.b16 %v411
    %v1326 = vunpack.c.h.b16 %v411
    %v1327 = vunpack.c.l.b16 %v412
    %v1328 = vunpack.c.h.b16 %v412
    %v1329 = vunpack.c.l.b16 %v413
    %v1330 = vunpack.c.h.b16 %v413
    %v1331 = vunpack.c.l.b16 %v414
    %v1332 = vunpack.c.h.b16 %v414
    %v1333 = vunpack.c.l.b16 %v415
    %v1334 = vunpack.c.h.b16 %v415
    %v1335 = vunpack.c.l.b16 %v416
    %v1336 = vunpack.c.h.b16 %v416
    %v1337 = vunpack.c.l.b16 %v417
    %v1338 = vunpack.c.h.b16 %v417
    %v1339 = vunpack.c.l.b16 %v418
    %v1340 = vunpack.c.h.b16 %v418
    %v1341 = vunpack.c.l.b16 %v419
    %v1342 = vunpack.c.h.b16 %v419
    %v1343 = vunpack.c.l.b16 %v420
    %v1344 = vunpack.c.h.b16 %v420
    %v1345 = vunpack.c.l.b16 %v421
    %v1346 = vunpack.c.h.b16 %v421
    %v1347 = vunpack.c.l.b16 %v422
    %v1348 = vunpack.c.h.b16 %v422
    %v1349 = vunpack.c.l.b16 %v423
    %v1350 = vunpack.c.h.b16 %v423
    %v1351 = vunpack.c.l.b16 %v424
    %v1352 = vunpack.c.h.b16 %v424
    %v1353 = vunpack.c.l.b16 %v425
    %v1354 = vunpack.c.h.b16 %v425
    %v1355 = vunpack.c.l.b16 %v426
    %v1356 = vunpack.c.h.b16 %v426
    %v1357 = vunpack.c.l.b16 %v427
    %v1358 = vunpack.c.h.b16 %v427
    %v1359 = vunpack.c.l.b16 %v428
    %v1360 = vunpack.c.h.b16 %v428
    %v1361 = vunpack.c.l.b16 %v429
    %v1362 = vunpack.c.h.b16 %v429
    %v1363 = vunpack.c.l.b16 %v430
    %v1364 = vunpack.c.h.b16 %v430
    %v1365 = vunpack.c.l.b16 %v431
    %v1366 = vunpack.c.h.b16 %v431
    %v1367 = vunpack.c.l.b16 %v432
    %v1368 = vunpack.c.h.b16 %v432
    %v1369 = vunpack.c.l.b16 %v433
    %v1370 = vunpack.c.h.b16 %v433
    %v1371 = vunpack.c.l.b16 %v434
    %v1372 = vunpack.c.h.b16 %v434
    %v1373 = vunpack.c.l.b16 %v435
    %v1374 = vunpack.c.h.b16 %v435
    %v1375 = vunpack.c.l.b16 %v436
    %v1376 = vunpack.c.h.b16 %v436
    %v1377 = vunpack.c.l.b16 %v437
    %v1378 = vunpack.c.h.b16 %v437
    %v1379 = vunpack.c.l.b16 %v438
    %v1380 = vunpack.c.h.b16 %v438
    %v1381 = vunpack.c.l.b16 %v439
    %v1382 = vunpack.c.h.b16 %v439
    %v1383 = vunpack.c.l.b16 %v440
    %v1384 = vunpack.c.h.b16 %v440
    %v1385 = vunpack.c.l.b16 %v441
    %v1386 = vunpack.c.h.b16 %v441
    %v1387 = vunpack.c.l.b16 %v442
    %v1388 = vunpack.c.h.b16 %v442
    %v1389 = vunpack.c.l.b16 %v443
    %v1390 = vunpack.c.h.b16 %v443
    %v1391 = vunpack.c.l.b16 %v444
    %v1392 = vunpack.c.h.b16 %v444
    %v1393 = vunpack.c.l.b16 %v445
    %v1394 = vunpack.c.h.b16 %v445
    %v1395 = vunpack.c.l.b16 %v446
    %v1396 = vunpack.c.h.b16 %v446
    %v1397 = vunpack.c.l.b16 %v447
    %v1398 = vunpack.c.h.b16 %v447
    %v1399 = vunpack.c.l.b16 %v448
    %v1400 = vunpack.c.h.b16 %v448
    %v1401 = vunpack.c.l.b16 %v449
    %v1402 = vunpack.c.h.b16 %v449
    %v1403 = vunpack.c.l.b16 %v450
    %v1404 = vunpack.c.h.b16 %v450
    %v1405 = vunpack.c.l.b16 %v451
    %v1406 = vunpack.c.h.b16 %v451
    %v1407 = vunpack.c.l.b16 %v452
    %v1408 = vunpack.c.h.b16 %v452
    %v1409 = vunpack.c.l.b16 %v453
    %v1410 = vunpack.c.h.b16 %v453
    %v1411 = vunpack.c.l.b16 %v454
    %v1412 = vunpack.c.h.b16 %v454
    %v1413 = vunpack.c.l.b16 %v455
    %v1414 = vunpack.c.h.b16 %v455
    %v1415 = vunpack.c.l.b16 %v456
    %v1416 = vunpack.c.h.b16 %v456
    %v1417 = vunpack.c.l.b16 %v457
    %v1418 = vunpack.c.h.b16 %v457
    %v1419 = vunpack.c.l.b16 %v458
    %v1420 = vunpack.c.h.b16 %v458
    %v1421 = vunpack.c.l.b16 %v459
    %v1422 = vunpack.c.h.b16 %v459
    %v1423 = vunpack.c.l.b16 %v460
    %v1424 = vunpack.c.h.b16 %v460
    %v1425 = vunpack.c.l.b16 %v461
    %v1426 = vunpack.c.h.b16 %v461
    %v1427 = vunpack.c.l.b16 %v462
    %v1428 = vunpack.c.h.b16 %v462
    %v1429 = vunpack.c.l.b16 %v463
    %v1430 = vunpack.c.h.b16 %v463
    %v1431 = vunpack.c.l.b16 %v464
    %v1432 = vunpack.c.h.b16 %v464
    %v1433 = vunpack.c.l.b16 %v465
    %v1434 = vunpack.c.h.b16 %v465
    %v1435 = vunpack.c.l.b16 %v466
    %v1436 = vunpack.c.h.b16 %v466
    %v1437 = vunpack.c.l.b16 %v467
    %v1438 = vunpack.c.h.b16 %v467
    %v1439 = vunpack.c.l.b16 %v468
    %v1440 = vunpack.c.h.b16 %v468
    %v1441 = vunpack.c.l.b16 %v469
    %v1442 = vunpack.c.h.b16 %v469
    %v1443 = vunpack.c.l.b16 %v470
    %v1444 = vunpack.c.h.b16 %v470
    %v1445 = vunpack.c.l.b16 %v471
    %v1446 = vunpack.c.h.b16 %v471
    %v1447 = vunpack.c.l.b16 %v472
    %v1448 = vunpack.c.h.b16 %v472
    %v1449 = vunpack.c.l.b16 %v473
    %v1450 = vunpack.c.h.b16 %v473
    %v1451 = vunpack.c.l.b16 %v474
    %v1452 = vunpack.c.h.b16 %v474
    %v1453 = vunpack.c.l.b16 %v475
    %v1454 = vunpack.c.h.b16 %v475
    %v1455 = vunpack.c.l.b16 %v476
    %v1456 = vunpack.c.h.b16 %v476
    %v1457 = vunpack.c.l.b16 %v477
    %v1458 = vunpack.c.h.b16 %v477
    %v1459 = vunpack.c.l.b16 %v478
    %v1460 = vunpack.c.h.b16 %v478
    %v1461 = vunpack.c.l.b16 %v479
    %v1462 = vunpack.c.h.b16 %v479
    %v1463 = vunpack.c.l.b16 %v480
    %v1464 = vunpack.c.h.b16 %v480
    %v1465 = vunpack.c.l.b16 %v481
    %v1466 = vunpack.c.h.b16 %v481
    %v1467 = vunpack.c.l.b16 %v482
    %v1468 = vunpack.c.h.b16 %v482
    %v1469 = vunpack.c.l.b16 %v483
    %v1470 = vunpack.c.h.b16 %v483
    %v1471 = vunpack.c.l.b16 %v484
    %v1472 = vunpack.c.h.b16 %v484
    %v1473 = vunpack.c.l.b16 %v485
    %v1474 = vunpack.c.h.b16 %v485
    %v1475 = vunpack.c.l.b16 %v486
    %v1476 = vunpack.c.h.b16 %v486
    %v1477 = vunpack.c.l.b16 %v487
    %v1478 = vunpack.c.h.b16 %v487
    %v1479 = vunpack.c.l.b16 %v488
    %v1480 = vunpack.c.h.b16 %v488
    %v1481 = vunpack.c.l.b16 %v489
    %v1482 = vunpack.c.h.b16 %v489
    %v1483 = vunpack.c.l.b16 %v490
    %v1484 = vunpack.c.h.b16 %v490
    %v1485 = vunpack.c.l.b16 %v491
    %v1486 = vunpack.c.h.b16 %v491
    %v1487 = vunpack.c.l.b16 %v492
    %v1488 = vunpack.c.h.b16 %v492
    %v1489 = vunpack.c.l.b16 %v493
    %v1490 = vunpack.c.h.b16 %v493
    %v1491 = vunpack.c.l.b16 %v494
    %v1492 = vunpack.c.h.b16 %v494
    %v1493 = vunpack.c.l.b16 %v495
    %v1494 = vunpack.c.h.b16 %v495
    %v1495 = vunpack.c.l.b16 %v496
    %v1496 = vunpack.c.h.b16 %v496
    %v1497 = vunpack.c.l.b16 %v497
    %v1498 = vunpack.c.h.b16 %v497
    %v1499 = vunpack.c.l.b16 %v498
    %v1500 = vunpack.c.h.b16 %v498
    %v1501 = vunpack.c.l.b16 %v499
    %v1502 = vunpack.c.h.b16 %v499
    %v1503 = vunpack.c.l.b16 %v500
    %v1504 = vunpack.c.h.b16 %v500
    %v1505 = vunpack.c.l.b16 %v501
    %v1506 = vunpack.c.h.b16 %v501
    %v1507 = vunpack.c.l.b16 %v502
    %v1508 = vunpack.c.h.b16 %v502
    %v1509 = vunpack.c.l.b16 %v503
    %v1510 = vunpack.c.h.b16 %v503
    %v1511 = vunpack.c.l.b16 %v504
    %v1512 = vunpack.c.h.b16 %v504
    %v1513 = vunpack.c.l.b16 %v505
    %v1514 = vunpack.c.h.b16 %v505
    %v1515 = vunpack.c.l.b16 %v506
    %v1516 = vunpack.c.h.b16 %v506
    %v1517 = vunpack.c.l.b16 %v507
    %v1518 = vunpack.c.h.b16 %v507
    %v1519 = vunpack.c.l.b16 %v508
    %v1520 = vunpack.c.h.b16 %v508
    %v1521 = vunpack.c.l.b16 %v509
    %v1522 = vunpack.c.h.b16 %v509
    %v1523 = vunpack.c.l.b16 %v510
    %v1524 = vunpack.c.h.b16 %v510
    %v1525 = vunpack.c.l.b16 %v511
    %v1526 = vunpack.c.h.b16 %v511
    %v1527 = vunpack.c.l.b16 %v512
    %v1528 = vunpack.c.h.b16 %v512
    %v1529 = vunpack.c.l.b16 %v513
    %v1530 = vunpack.c.h.b16 %v513
    %v1531 = vunpack.c.l.b16 %v514
    %v1532 = vunpack.c.h.b16 %v514
    %v1533 = vunpack.c.l.b16 %v515
    %v1534 = vunpack.c.h.b16 %v515
    %v1535 = vunpack.c.l.b16 %v516
    %v1536 = vunpack.c.h.b16 %v516
    %v1537 = vunpack.c.l.b16 %v517
    %v1538 = vunpack.c.h.b16 %v517
    %v1539 = vunpack.c.l.b16 %v518
    %v1540 = vunpack.c.h.b16 %v518
    %v1541 = vunpack.c.l.b16 %v519
    %v1542 = vunpack.c.h.b16 %v519
    %v1543 = vunpack.c.l.b16 %v520
    %v1544 = vunpack.c.h.b16 %v520
    %v1545 = vunpack.c.l.b16 %v521
    %v1546 = vunpack.c.h.b16 %v521
    %v1547 = vunpack.c.l.b16 %v522
    %v1548 = vunpack.c.h.b16 %v522
    %v1549 = vunpack.c.l.b16 %v523
    %v1550 = vunpack.c.h.b16 %v523
    %v1551 = vunpack.c.l.b16 %v524
    %v1552 = vunpack.c.h.b16 %v524
    %v1553 = vunpack.c.l.b16 %v525
    %v1554 = vunpack.c.h.b16 %v525
    %v1555 = vunpack.c.l.b16 %v526
    %v1556 = vunpack.c.h.b16 %v526
    %v1557 = vunpack.c.l.b16 %v527
    %v1558 = vunpack.c.h.b16 %v527
    %v1559 = vunpack.c.l.b16 %v528
    %v1560 = vunpack.c.h.b16 %v528
    %v1561 = vunpack.c.l.b16 %v529
    %v1562 = vunpack.c.h.b16 %v529
    %v1563 = vunpack.c.l.b16 %v530
    %v1564 = vunpack.c.h.b16 %v530
    %v1565 = vunpack.c.l.b16 %v531
    %v1566 = vunpack.c.h.b16 %v531
    %v1567 = vunpack.c.l.b16 %v532
    %v1568 = vunpack.c.h.b16 %v532
    %v1569 = vunpack.c.l.b16 %v533
    %v1570 = vunpack.c.h.b16 %v533
    %v1571 = vunpack.c.l.b16 %v534
    %v1572 = vunpack.c.h.b16 %v534
    %v1573 = vunpack.c.l.b16 %v535
    %v1574 = vunpack.c.h.b16 %v535
    %v1575 = vunpack.c.l.b16 %v536
    %v1576 = vunpack.c.h.b16 %v536
    %v1577 = vunpack.c.l.b16 %v537
    %v1578 = vunpack.c.h.b16 %v537
    %v1579 = vunpack.c.l.b16 %v538
    %v1580 = vunpack.c.h.b16 %v538
    %v1581 = vunpack.c.l.b16 %v539
    %v1582 = vunpack.c.h.b16 %v539
    %v1583 = vunpack.c.l.b16 %v540
    %v1584 = vunpack.c.h.b16 %v540
    %v1585 = vunpack.c.l.b16 %v541
    %v1586 = vunpack.c.h.b16 %v541
    %v1587 = vunpack.c.l.b16 %v542
    %v1588 = vunpack.c.h.b16 %v542
    %v1589 = vunpack.c.l.b16 %v543
    %v1590 = vunpack.c.h.b16 %v543
    %v1591 = vunpack.c.l.b16 %v544
    %v1592 = vunpack.c.h.b16 %v544
    %v1593 = vunpack.c.l.b16 %v545
    %v1594 = vunpack.c.h.b16 %v545
    %v1595 = vunpack.c.l.b16 %v546
    %v1596 = vunpack.c.h.b16 %v546
    %v1597 = vunpack.c.l.b16 %v547
    %v1598 = vunpack.c.h.b16 %v547
    %v1599 = vunpack.c.l.b16 %v548
    %v1600 = vunpack.c.h.b16 %v548
    %v1601 = vunpack.c.l.b16 %v549
    %v1602 = vunpack.c.h.b16 %v549
    %v1603 = vunpack.c.l.b16 %v550
    %v1604 = vunpack.c.h.b16 %v550
    %v1605 = vunpack.c.l.b16 %v551
    %v1606 = vunpack.c.h.b16 %v551
    %v1607 = vunpack.c.l.b16 %v552
    %v1608 = vunpack.c.h.b16 %v552
    %v1609 = vunpack.c.l.b16 %v553
    %v1610 = vunpack.c.h.b16 %v553
    %v1611 = vunpack.c.l.b16 %v554
    %v1612 = vunpack.c.h.b16 %v554
    %v1613 = vunpack.c.l.b16 %v555
    %v1614 = vunpack.c.h.b16 %v555
    %v1615 = vunpack.c.l.b16 %v556
    %v1616 = vunpack.c.h.b16 %v556
    %v1617 = vunpack.c.l.b16 %v557
    %v1618 = vunpack.c.h.b16 %v557
    %v1619 = vunpack.c.l.b16 %v558
    %v1620 = vunpack.c.h.b16 %v558
    %v1621 = vunpack.c.l.b16 %v559
    %v1622 = vunpack.c.h.b16 %v559
    %v1623 = vunpack.c.l.b16 %v560
    %v1624 = vunpack.c.h.b16 %v560
    %v1625 = vunpack.c.l.b16 %v561
    %v1626 = vunpack.c.h.b16 %v561
    %v1627 = vunpack.c.l.b16 %v562
    %v1628 = vunpack.c.h.b16 %v562
    %v1629 = vunpack.c.l.b16 %v563
    %v1630 = vunpack.c.h.b16 %v563
    %v1631 = vunpack.c.l.b16 %v564
    %v1632 = vunpack.c.h.b16 %v564
    %v1633 = vunpack.c.l.b16 %v565
    %v1634 = vunpack.c.h.b16 %v565
    %v1635 = vunpack.c.l.b16 %v566
    %v1636 = vunpack.c.h.b16 %v566
    %v1637 = vunpack.c.l.b16 %v567
    %v1638 = vunpack.c.h.b16 %v567
    %v1639 = vunpack.c.l.b16 %v568
    %v1640 = vunpack.c.h.b16 %v568
    %v1641 = vunpack.c.l.b16 %v569
    %v1642 = vunpack.c.h.b16 %v569
    %v1643 = vunpack.c.l.b16 %v570
    %v1644 = vunpack.c.h.b16 %v570
    %v1645 = vunpack.c.l.b16 %v571
    %v1646 = vunpack.c.h.b16 %v571
    %v1647 = vunpack.c.l.b16 %v572
    %v1648 = vunpack.c.h.b16 %v572
    %v1649 = vunpack.c.l.b16 %v573
    %v1650 = vunpack.c.h.b16 %v573
    %v1651 = vunpack.c.l.b16 %v574
    %v1652 = vunpack.c.h.b16 %v574
    %v1653 = vunpack.c.l.b16 %v575
    %v1654 = vunpack.c.h.b16 %v575
    %v1655 = vunpack.c.l.b16 %v576
    %v1656 = vunpack.c.h.b16 %v576
    %v1657 = vunpack.c.l.b16 %v577
    %v1658 = vunpack.c.h.b16 %v577
    %v1659 = vunpack.c.l.b16 %v578
    %v1660 = vunpack.c.h.b16 %v578
    %v1661 = vunpack.c.l.b16 %v579
    %v1662 = vunpack.c.h.b16 %v579
    %v1663 = vunpack.c.l.b16 %v580
    %v1664 = vunpack.c.h.b16 %v580
    %v1665 = vunpack.c.l.b16 %v581
    %v1666 = vunpack.c.h.b16 %v581
    %v1667 = vunpack.c.l.b16 %v582
    %v1668 = vunpack.c.h.b16 %v582
    %v1669 = vunpack.c.l.b16 %v583
    %v1670 = vunpack.c.h.b16 %v583
    %v1671 = vunpack.c.l.b16 %v584
    %v1672 = vunpack.c.h.b16 %v584
    %v1673 = vunpack.c.l.b16 %v585
    %v1674 = vunpack.c.h.b16 %v585
    %v1675 = vunpack.c.l.b16 %v586
    %v1676 = vunpack.c.h.b16 %v586
    %v1677 = vunpack.c.l.b16 %v587
    %v1678 = vunpack.c.h.b16 %v587
    %v1679 = vunpack.c.l.b16 %v588
    %v1680 = vunpack.c.h.b16 %v588
    %v1681 = vunpack.c.l.b16 %v589
    %v1682 = vunpack.c.h.b16 %v589
    %v1683 = vunpack.c.l.b16 %v590
    %v1684 = vunpack.c.h.b16 %v590
    %v1685 = vunpack.c.l.b16 %v591
    %v1686 = vunpack.c.h.b16 %v591
    %v1687 = vunpack.c.l.b16 %v592
    %v1688 = vunpack.c.h.b16 %v592
    %v1689 = vunpack.c.l.b16 %v593
    %v1690 = vunpack.c.h.b16 %v593
    %v1691 = vunpack.c.l.b16 %v594
    %v1692 = vunpack.c.h.b16 %v594
    %v1693 = vunpack.c.l.b16 %v595
    %v1694 = vunpack.c.h.b16 %v595
    %v1695 = vunpack.c.l.b16 %v596
    %v1696 = vunpack.c.h.b16 %v596
    %v1697 = vunpack.c.l.b16 %v597
    %v1698 = vunpack.c.h.b16 %v597
    %v1699 = vunpack.c.l.b16 %v598
    %v1700 = vunpack.c.h.b16 %v598
    %v1701 = vunpack.c.l.b16 %v599
    %v1702 = vunpack.c.h.b16 %v599
    %v1703 = vunpack.c.l.b16 %v600
    %v1704 = vunpack.c.h.b16 %v600
    %v1705 = vunpack.c.l.b16 %v601
    %v1706 = vunpack.c.h.b16 %v601
    %v1707 = vunpack.c.l.b16 %v602
    %v1708 = vunpack.c.h.b16 %v602
    %v1709 = vunpack.c.l.b16 %v603
    %v1710 = vunpack.c.h.b16 %v603
    %v1711 = vunpack.c.l.b16 %v604
    %v1712 = vunpack.c.h.b16 %v604
    %v1713 = vunpack.c.l.b16 %v605
    %v1714 = vunpack.c.h.b16 %v605
    %v1715 = vunpack.c.l.b16 %v606
    %v1716 = vunpack.c.h.b16 %v606
    %v1717 = vunpack.c.l.b16 %v607
    %v1718 = vunpack.c.h.b16 %v607
    %v1719 = vunpack.c.l.b16 %v608
    %v1720 = vunpack.c.h.b16 %v608
    %v1721 = vunpack.c.l.b16 %v609
    %v1722 = vunpack.c.h.b16 %v609
    %v1723 = vunpack.c.l.b16 %v610
    %v1724 = vunpack.c.h.b16 %v610
    %v1725 = vunpack.c.l.b16 %v611
    %v1726 = vunpack.c.h.b16 %v611
    %v1727 = vunpack.c.l.b16 %v612
    %v1728 = vunpack.c.h.b16 %v612
    %v1729 = vunpack.c.l.b16 %v613
    %v1730 = vunpack.c.h.b16 %v613
    %v1731 = vunpack.c.l.b16 %v614
    %v1732 = vunpack.c.h.b16 %v614
    %v1733 = vunpack.c.l.b16 %v615
    %v1734 = vunpack.c.h.b16 %v615
    %v1735 = vunpack.c.l.b16 %v616
    %v1736 = vunpack.c.h.b16 %v616
    %v1737 = vunpack.c.l.b16 %v617
    %v1738 = vunpack.c.h.b16 %v617
    %v1739 = vunpack.c.l.b16 %v618
    %v1740 = vunpack.c.h.b16 %v618
    %v1741 = vunpack.c.l.b16 %v619
    %v1742 = vunpack.c.h.b16 %v619
    %v1743 = vunpack.c.l.b16 %v620
    %v1744 = vunpack.c.h.b16 %v620
    %v1745 = vunpack.c.l.b16 %v621
    %v1746 = vunpack.c.h.b16 %v621
    %v1747 = vunpack.c.l.b16 %v622
    %v1748 = vunpack.c.h.b16 %v622
    %v1749 = vunpack.c.l.b16 %v623
    %v1750 = vunpack.c.h.b16 %v623
    %v1751 = vunpack.c.l.b16 %v624
    %v1752 = vunpack.c.h.b16 %v624
    %v1753 = vunpack.c.l.b16 %v625
    %v1754 = vunpack.c.h.b16 %v625
    %v1755 = vunpack.c.l.b16 %v626
    %v1756 = vunpack.c.h.b16 %v626
    %v1757 = vunpack.c.l.b16 %v627
    %v1758 = vunpack.c.h.b16 %v627
    %v1759 = vunpack.c.l.b16 %v628
    %v1760 = vunpack.c.h.b16 %v628
    %v1761 = vunpack.c.l.b16 %v629
    %v1762 = vunpack.c.h.b16 %v629
    %v1763 = vunpack.c.l.b16 %v630
    %v1764 = vunpack.c.h.b16 %v630
    %v1765 = vunpack.c.l.b16 %v631
    %v1766 = vunpack.c.h.b16 %v631
    %v1767 = vunpack.c.l.b16 %v632
    %v1768 = vunpack.c.h.b16 %v632
    %v1769 = vunpack.c.l.b16 %v633
    %v1770 = vunpack.c.h.b16 %v633
    %v1771 = vunpack.c.l.b16 %v634
    %v1772 = vunpack.c.h.b16 %v634
    %v1773 = vunpack.c.l.b16 %v635
    %v1774 = vunpack.c.h.b16 %v635
    %v1775 = vunpack.c.l.b16 %v636
    %v1776 = vunpack.c.h.b16 %v636
    %v1777 = vunpack.c.l.b16 %v637
    %v1778 = vunpack.c.h.b16 %v637
    %v1779 = vunpack.c.l.b16 %v638
    %v1780 = vunpack.c.h.b16 %v638
    %v1781 = vunpack.c.l.b16 %v639
    %v1782 = vunpack.c.h.b16 %v639
    %v1783 = vunpack.c.l.b16 %v640
    %v1784 = vunpack.c.h.b16 %v640
    %v1785 = vunpack.c.l.b16 %v641
    %v1786 = vunpack.c.h.b16 %v641
    %v1787 = vunpack.c.l.b16 %v642
    %v1788 = vunpack.c.h.b16 %v642
    %v1789 = vunpack.c.l.b16 %v643
    %v1790 = vunpack.c.h.b16 %v643
    %v1791 = vunpack.c.l.b16 %v644
    %v1792 = vunpack.c.h.b16 %v644
    %v1793 = vunpack.c.l.b16 %v645
    %v1794 = vunpack.c.h.b16 %v645
    %v1795 = vunpack.c.l.b16 %v646
    %v1796 = vunpack.c.h.b16 %v646
    %v1797 = vunpack.c.l.b16 %v647
    %v1798 = vunpack.c.h.b16 %v647
    %v1799 = vunpack.c.l.b16 %v648
    %v1800 = vunpack.c.h.b16 %v648
    %v1801 = vunpack.c.l.b16 %v649
    %v1802 = vunpack.c.h.b16 %v649
    %v1803 = vunpack.c.l.b16 %v650
    %v1804 = vunpack.c.h.b16 %v650
    %v1805 = vunpack.c.l.b16 %v651
    %v1806 = vunpack.c.h.b16 %v651
    %v1807 = vunpack.c.l.b16 %v652
    %v1808 = vunpack.c.h.b16 %v652
    %v1809 = vunpack.c.l.b16 %v653
    %v1810 = vunpack.c.h.b16 %v653
    %v1811 = vunpack.c.l.b16 %v654
    %v1812 = vunpack.c.h.b16 %v654
    %v1813 = vunpack.c.l.b16 %v655
    %v1814 = vunpack.c.h.b16 %v655
    %v1815 = vunpack.c.l.b16 %v656
    %v1816 = vunpack.c.h.b16 %v656
    %v1817 = vunpack.c.l.b16 %v657
    %v1818 = vunpack.c.h.b16 %v657
    %v1819 = vunpack.c.l.b16 %v658
    %v1820 = vunpack.c.h.b16 %v658
    %v1821 = vunpack.c.l.b16 %v659
    %v1822 = vunpack.c.h.b16 %v659
    %v1823 = vunpack.c.l.b16 %v660
    %v1824 = vunpack.c.h.b16 %v660
    %v1825 = vpack.c.b16 %v1059, %v1057
    %v1826 = vpack.c.b16 %v1060, %v1058
    %v1827 = vpack.c.b16 %v1063, %v1061
    %v1828 = vpack.c.b16 %v1064, %v1062
    %v1829 = vpack.c.b16 %v1067, %v1065
    %v1830 = vpack.c.b16 %v1068, %v1066
    %v1831 = vpack.c.b16 %v1071, %v1069
    %v1832 = vpack.c.b16 %v1072, %v1070
    %v1833 = vpack.c.b16 %v1075, %v1073
    %v1834 = vpack.c.b16 %v1076, %v1074
    %v1835 = vpack.c.b16 %v1079, %v1077
    %v1836 = vpack.c.b16 %v1080, %v1078
    %v1837 = vpack.c.b16 %v1083, %v1081
    %v1838 = vpack.c.b16 %v1084, %v1082
    %v1839 = vpack.c.b16 %v1087, %v1085
    %v1840 = vpack.c.b16 %v1088, %v1086
    %v1841 = vpack.c.b16 %v1091, %v1089
    %v1842 = vpack.c.b16 %v1092, %v1090
    %v1843 = vpack.c.b16 %v1095, %v1093
    %v1844 = vpack.c.b16 %v1096, %v1094
    %v1845 = vpack.c.b16 %v1099, %v1097
    %v1846 = vpack.c.b16 %v1100, %v1098
    %v1847 = vpack.c.b16 %v1103, %v1101
    %v1848 = vpack.c.b16 %v1104, %v1102
    %v1849 = vpack.c.b16 %v1107, %v1105
    %v1850 = vpack.c.b16 %v1108, %v1106
    %v1851 = vpack.c.b16 %v1111, %v1109
    %v1852 = vpack.c.b16 %v1112, %v1110
    %v1853 = vpack.c.b16 %v1115, %v1113
    %v1854 = vpack.c.b16 %v1116, %v1114
    %v1855 = vpack.c.b16 %v1119, %v1117
    %v1856 = vpack.c.b16 %v1120, %v1118
    %v1857 = vpack.c.b16 %v1123, %v1121
    %v1858 = vpack.c.b16 %v1124, %v1122
    %v1859 = vpack.c.b16 %v1127, %v1125
    %v1860 = vpack.c.b16 %v1128, %v1126
    %v1861 = vpack.c.b16 %v1131, %v1129
    %v1862 = vpack.c.b16 %v1132, %v1130
    %v1863 = vpack.c.b16 %v1135, %v1133
    %v1864 = vpack.c.b16 %v1136, %v1134
    %v1865 = vpack.c.b16 %v1139, %v1137
    %v1866 = vpack.c.b16 %v1140, %v1138
    %v1867 = vpack.c.b16 %v1143, %v1141
    %v1868 = vpack.c.b16 %v1144, %v1142
    %v1869 = vpack.c.b16 %v1147, %v1145
    %v1870 = vpack.c.b16 %v1148, %v1146
    %v1871 = vpack.c.b16 %v1151, %v1149
    %v1872 = vpack.c.b16 %v1152, %v1150
    %v1873 = vpack.c.b16 %v1155, %v1153
    %v1874 = vpack.c.b16 %v1156, %v1154
    %v1875 = vpack.c.b16 %v1159, %v1157
    %v1876 = vpack.c.b16 %v1160, %v1158
    %v1877 = vpack.c.b16 %v1163, %v1161
    %v1878 = vpack.c.b16 %v1164, %v1162
    %v1879 = vpack.c.b16 %v1167, %v1165
    %v1880 = vpack.c.b16 %v1168, %v1166
    %v1881 = vpack.c.b16 %v1171, %v1169
    %v1882 = vpack.c.b16 %v1172, %v1170
    %v1883 = vpack.c.b16 %v1175, %v1173
    %v1884 = vpack.c.b16 %v1176, %v1174
    %v1885 = vpack.c.b16 %v1179, %v1177
    %v1886 = vpack.c.b16 %v1180, %v1178
    %v1887 = vpack.c.b16 %v1183, %v1181
    %v1888 = vpack.c.b16 %v1184, %v1182
    %v1889 = vpack.c.b16 %v1187, %v1185
    %v1890 = vpack.c.b16 %v1188, %v1186
    %v1891 = vpack.c.b16 %v1191, %v1189
    %v1892 = vpack.c.b16 %v1192, %v1190
    %v1893 = vpack.c.b16 %v1195, %v1193
    %v1894 = vpack.c.b16 %v1196, %v1194
    %v1895 = vpack.c.b16 %v1199, %v1197
    %v1896 = vpack.c.b16 %v1200, %v1198
    %v1897 = vpack.c.b16 %v1203, %v1201
    %v1898 = vpack.c.b16 %v1204, %v1202
    %v1899 = vpack.c.b16 %v1207, %v1205
    %v1900 = vpack.c.b16 %v1208, %v1206
    %v1901 = vpack.c.b16 %v1211, %v1209
    %v1902 = vpack.c.b16 %v1212, %v1210
    %v1903 = vpack.c.b16 %v1215, %v1213
    %v1904 = vpack.c.b16 %v1216, %v1214
    %v1905 = vpack.c.b16 %v1219, %v1217
    %v1906 = vpack.c.b16 %v1220, %v1218
    %v1907 = vpack.c.b16 %v1223, %v1221
    %v1908 = vpack.c.b16 %v1224, %v1222
    %v1909 = vpack.c.b16 %v1227, %v1225
    %v1910 = vpack.c.b16 %v1228, %v1226
    %v1911 = vpack.c.b16 %v1231, %v1229
    %v1912 = vpack.c.b16 %v1232, %v1230
    %v1913 = vpack.c.b16 %v1235, %v1233
    %v1914 = vpack.c.b16 %v1236, %v1234
    %v1915 = vpack.c.b16 %v1239, %v1237
    %v1916 = vpack.c.b16 %v1240, %v1238
    %v1917 = vpack.c.b16 %v1243, %v1241
    %v1918 = vpack.c.b16 %v1244, %v1242
    %v1919 = vpack.c.b16 %v1247, %v1245
    %v1920 = vpack.c.b16 %v1248, %v1246
    %v1921 = vpack.c.b16 %v1251, %v1249
    %v1922 = vpack.c.b16 %v1252, %v1250
    %v1923 = vpack.c.b16 %v1255, %v1253
    %v1924 = vpack.c.b16 %v1256, %v1254
    %v1925 = vpack.c.b16 %v1259, %v1257
    %v1926 = vpack.c.b16 %v1260, %v1258
    %v1927 = vpack.c.b16 %v1263, %v1261
    %v1928 = vpack.c.b16 %v1264, %v1262
    %v1929 = vpack.c.b16 %v1267, %v1265
    %v1930 = vpack.c.b16 %v1268, %v1266
    %v1931 = vpack.c.b16 %v1271, %v1269
    %v1932 = vpack.c.b16 %v1272, %v1270
    %v1933 = vpack.c.b16 %v1275, %v1273
    %v1934 = vpack.c.b16 %v1276, %v1274
    %v1935 = vpack.c.b16 %v1279, %v1277
    %v1936 = vpack.c.b16 %v1280, %v1278
    %v1937 = vpack.c.b16 %v1283, %v1281
    %v1938 = vpack.c.b16 %v1284, %v1282
    %v1939 = vpack.c.b16 %v1287, %v1285
    %v1940 = vpack.c.b16 %v1288, %v1286
    %v1941 = vpack.c.b16 %v1291, %v1289
    %v1942 = vpack.c.b16 %v1292, %v1290
    %v1943 = vpack.c.b16 %v1295, %v1293
    %v1944 = vpack.c.b16 %v1296, %v1294
    %v1945 = vpack.c.b16 %v1299, %v1297
    %v1946 = vpack.c.b16 %v1300, %v1298
    %v1947 = vpack.c.b16 %v1303, %v1301
    %v1948 = vpack.c.b16 %v1304, %v1302
    %v1949 = vpack.c.b16 %v1307, %v1305
    %v1950 = vpack.c.b16 %v1308, %v1306
    %v1951 = vpack.c.b16 %v1311, %v1309
    %v1952 = vpack.c.b16 %v1312, %v1310
    %v1953 = vpack.c.b16 %v1315, %v1313
    %v1954 = vpack.c.b16 %v1316, %v1314
    %v1955 = vpack.c.b16 %v1319, %v1317
    %v1956 = vpack.c.b16 %v1320, %v1318
    %v1957 = vpack.c.b16 %v1323, %v1321
    %v1958 = vpack.c.b16 %v1324, %v1322
    %v1959 = vpack.c.b16 %v1327, %v1325
    %v1960 = vpack.c.b16 %v1328, %v1326
    %v1961 = vpack.c.b16 %v1331, %v1329
    %v1962 = vpack.c.b16 %v1332, %v1330
    %v1963 = vpack.c.b16 %v1335, %v1333
    %v1964 = vpack.c.b16 %v1336, %v1334
    %v1965 = vpack.c.b16 %v1339, %v1337
    %v1966 = vpack.c.b16 %v1340, %v1338
    %v1967 = vpack.c.b16 %v1343, %v1341
    %v1968 = vpack.c.b16 %v1344, %v1342
    %v1969 = vpack.c.b16 %v1347, %v1345
    %v1970 = vpack.c.b16 %v1348, %v1346
    %v1971 = vpack.c.b16 %v1351, %v1349
    %v1972 = vpack.c.b16 %v1352, %v1350
    %v1973 = vpack.c.b16 %v1355, %v1353
    %v1974 = vpack.c.b16 %v1356, %v1354
    %v1975 = vpack.c.b16 %v1359, %v1357
    %v1976 = vpack.c.b16 %v1360, %v1358
    %v1977 = vpack.c.b16 %v1363, %v1361
    %v1978 = vpack.c.b16 %v1364, %v1362
    %v1979 = vpack.c.b16 %v1367, %v1365
    %v1980 = vpack.c.b16 %v1368, %v1366
    %v1981 = vpack.c.b16 %v1371, %v1369
    %v1982 = vpack.c.b16 %v1372, %v1370
    %v1983 = vpack.c.b16 %v1375, %v1373
    %v1984 = vpack.c.b16 %v1376, %v1374
    %v1985 = vpack.c.b16 %v1379, %v1377
    %v1986 = vpack.c.b16 %v1380, %v1378
    %v1987 = vpack.c.b16 %v1383, %v1381
    %v1988 = vpack.c.b16 %v1384, %v1382
    %v1989 = vpack.c.b16 %v1387, %v1385
    %v1990 = vpack.c.b16 %v1388, %v1386
    %v1991 = vpack.c.b16 %v1391, %v1389
    %v1992 = vpack.c.b16 %v1392, %v1390
    %v1993 = vpack.c.b16 %v1395, %v1393
    %v1994 = vpack.c.b16 %v1396, %v1394
    %v1995 = vpack.c.b16 %v1399, %v1397
    %v1996 = vpack.c.b16 %v1400, %v1398
    %v1997 = vpack.c.b16 %v1403, %v1401
    %v1998 = vpack.c.b16 %v1404, %v1402
    %v1999 = vpack.c.b16 %v1407, %v1405
    %v2000 = vpack.c.b16 %v1408, %v1406
    %v2001 = vpack.c.b16 %v1411, %v1409
    %v2002 = vpack.c.b16 %v1412, %v1410
    %v2003 = vpack.c.b16 %v1415, %v1413
    %v2004 = vpack.c.b16 %v1416, %v1414
    %v2005 = vpack.c.b16 %v1419, %v1417
    %v2006 = vpack.c.b16 %v1420, %v1418
    %v2007 = vpack.c.b16 %v1423, %v1421
    %v2008 = vpack.c.b16 %v1424, %v1422
    %v2009 = vpack.c.b16 %v1427, %v1425
    %v2010 = vpack.c.b16 %v1428, %v1426
    %v2011 = vpack.c.b16 %v1431, %v1429
    %v2012 = vpack.c.b16 %v1432, %v1430
    %v2013 = vpack.c.b16 %v1435, %v1433
    %v2014 = vpack.c.b16 %v1436, %v1434
    %v2015 = vpack.c.b16 %v1439, %v1437
    %v2016 = vpack.c.b16 %v1440, %v1438
    %v2017 = vpack.c.b16 %v1443, %v1441
    %v2018 = vpack.c.b16 %v1444, %v1442
    %v2019 = vpack.c.b16 %v1447, %v1445
    %v2020 = vpack.c.b16 %v1448, %v1446
    %v2021 = vpack.c.b16 %v1451, %v1449
    %v2022 = vpack.c.b16 %v1452, %v1450
    %v2023 = vpack.c.b16 %v1455, %v1453
    %v2024 = vpack.c.b16 %v1456, %v1454
    %v2025 = vpack.c.b16 %v1459, %v1457
    %v2026 = vpack.c.b16 %v1460, %v1458
    %v2027 = vpack.c.b16 %v1463, %v1461
    %v2028 = vpack.c.b16 %v1464, %v1462
    %v2029 = vpack.c.b16 %v1467, %v1465
    %v2030 = vpack.c.b16 %v1468, %v1466
    %v2031 = vpack.c.b16 %v1471, %v1469
    %v2032 = vpack.c.b16 %v1472, %v1470
    %v2033 = vpack.c.b16 %v1475, %v1473
    %v2034 = vpack.c.b16 %v1476, %v1474
    %v2035 = vpack.c.b16 %v1479, %v1477
    %v2036 = vpack.c.b16 %v1480, %v1478
    %v2037 = vpack.c.b16 %v1483, %v1481
    %v2038 = vpack.c.b16 %v1484, %v1482
    %v2039 = vpack.c.b16 %v1487, %v1485
    %v2040 = vpack.c.b16 %v1488, %v1486
    %v2041 = vpack.c.b16 %v1491, %v1489
    %v2042 = vpack.c.b16 %v1492, %v1490
    %v2043 = vpack.c.b16 %v1495, %v1493
    %v2044 = vpack.c.b16 %v1496, %v1494
    %v2045 = vpack.c.b16 %v1499, %v1497
    %v2046 = vpack.c.b16 %v1500, %v1498
    %v2047 = vpack.c.b16 %v1503, %v1501
    %v2048 = vpack.c.b16 %v1504, %v1502
    %v2049 = vpack.c.b16 %v1507, %v1505
    %v2050 = vpack.c.b16 %v1508, %v1506
    %v2051 = vpack.c.b16 %v1511, %v1509
    %v2052 = vpack.c.b16 %v1512, %v1510
    %v2053 = vpack.c.b16 %v1515, %v1513
    %v2054 = vpack.c.b16 %v1516, %v1514
    %v2055 = vpack.c.b16 %v1519, %v1517
    %v2056 = vpack.c.b16 %v1520, %v1518
    %v2057 = vpack.c.b16 %v1523, %v1521
    %v2058 = vpack.c.b16 %v1524, %v1522
    %v2059 = vpack.c.b16 %v1527, %v1525
    %v2060 = vpack.c.b16 %v1528, %v1526
    %v2061 = vpack.c.b16 %v1531, %v1529
    %v2062 = vpack.c.b16 %v1532, %v1530
    %v2063 = vpack.c.b16 %v1535, %v1533
    %v2064 = vpack.c.b16 %v1536, %v1534
    %v2065 = vpack.c.b16 %v1539, %v1537
    %v2066 = vpack.c.b16 %v1540, %v1538
    %v2067 = vpack.c.b16 %v1543, %v1541
    %v2068 = vpack.c.b16 %v1544, %v1542
    %v2069 = vpack.c.b16 %v1547, %v1545
    %v2070 = vpack.c.b16 %v1548, %v1546
    %v2071 = vpack.c.b16 %v1551, %v1549
    %v2072 = vpack.c.b16 %v1552, %v1550
    %v2073 = vpack.c.b16 %v1555, %v1553
    %v2074 = vpack.c.b16 %v1556, %v1554
    %v2075 = vpack.c.b16 %v1559, %v1557
    %v2076 = vpack.c.b16 %v1560, %v1558
    %v2077 = vpack.c.b16 %v1563, %v1561
    %v2078 = vpack.c.b16 %v1564, %v1562
    %v2079 = vpack.c.b16 %v1567, %v1565
    %v2080 = vpack.c.b16 %v1568, %v1566
    %v2081 = vpack.c.b16 %v1571, %v1569
    %v2082 = vpack.c.b16 %v1572, %v1570
    %v2083 = vpack.c.b16 %v1575, %v1573
    %v2084 = vpack.c.b16 %v1576, %v1574
    %v2085 = vpack.c.b16 %v1579, %v1577
    %v2086 = vpack.c.b16 %v1580, %v1578
    %v2087 = vpack.c.b16 %v1583, %v1581
    %v2088 = vpack.c.b16 %v1584, %v1582
    %v2089 = vpack.c.b16 %v1587, %v1585
    %v2090 = vpack.c.b16 %v1588, %v1586
    %v2091 = vpack.c.b16 %v1591, %v1589
    %v2092 = vpack.c.b16 %v1592, %v1590
    %v2093 = vpack.c.b16 %v1595, %v1593
    %v2094 = vpack.c.b16 %v1596, %v1594
    %v2095 = vpack.c.b16 %v1599, %v1597
    %v2096 = vpack.c.b16 %v1600, %v1598
    %v2097 = vpack.c.b16 %v1603, %v1601
    %v2098 = vpack.c.b16 %v1604, %v1602
    %v2099 = vpack.c.b16 %v1607, %v1605
    %v2100 = vpack.c.b16 %v1608, %v1606
    %v2101 = vpack.c.b16 %v1611, %v1609
    %v2102 = vpack.c.b16 %v1612, %v1610
    %v2103 = vpack.c.b16 %v1615, %v1613
    %v2104 = vpack.c.b16 %v1616, %v1614
    %v2105 = vpack.c.b16 %v1619, %v1617
    %v2106 = vpack.c.b16 %v1620, %v1618
    %v2107 = vpack.c.b16 %v1623, %v1621
    %v2108 = vpack.c.b16 %v1624, %v1622
    %v2109 = vpack.c.b16 %v1627, %v1625
    %v2110 = vpack.c.b16 %v1628, %v1626
    %v2111 = vpack.c.b16 %v1631, %v1629
    %v2112 = vpack.c.b16 %v1632, %v1630
    %v2113 = vpack.c.b16 %v1635, %v1633
    %v2114 = vpack.c.b16 %v1636, %v1634
    %v2115 = vpack.c.b16 %v1639, %v1637
    %v2116 = vpack.c.b16 %v1640, %v1638
    %v2117 = vpack.c.b16 %v1643, %v1641
    %v2118 = vpack.c.b16 %v1644, %v1642
    %v2119 = vpack.c.b16 %v1647, %v1645
    %v2120 = vpack.c.b16 %v1648, %v1646
    %v2121 = vpack.c.b16 %v1651, %v1649
    %v2122 = vpack.c.b16 %v1652, %v1650
    %v2123 = vpack.c.b16 %v1655, %v1653
    %v2124 = vpack.c.b16 %v1656, %v1654
    %v2125 = vpack.c.b16 %v1659, %v1657
    %v2126 = vpack.c.b16 %v1660, %v1658
    %v2127 = vpack.c.b16 %v1663, %v1661
    %v2128 = vpack.c.b16 %v1664, %v1662
    %v2129 = vpack.c.b16 %v1667, %v1665
    %v2130 = vpack.c.b16 %v1668, %v1666
    %v2131 = vpack.c.b16 %v1671, %v1669
    %v2132 = vpack.c.b16 %v1672, %v1670
    %v2133 = vpack.c.b16 %v1675, %v1673
    %v2134 = vpack.c.b16 %v1676, %v1674
    %v2135 = vpack.c.b16 %v1679, %v1677
    %v2136 = vpack.c.b16 %v1680, %v1678
    %v2137 = vpack.c.b16 %v1683, %v1681
    %v2138 = vpack.c.b16 %v1684, %v1682
    %v2139 = vpack.c.b16 %v1687, %v1685
    %v2140 = vpack.c.b16 %v1688, %v1686
    %v2141 = vpack.c.b16 %v1691, %v1689
    %v2142 = vpack.c.b16 %v1692, %v1690
    %v2143 = vpack.c.b16 %v1695, %v1693
    %v2144 = vpack.c.b16 %v1696, %v1694
    %v2145 = vpack.c.b16 %v1699, %v1697
    %v2146 = vpack.c.b16 %v1700, %v1698
    %v2147 = vpack.c.b16 %v1703, %v1701
    %v2148 = vpack.c.b16 %v1704, %v1702
    %v2149 = vpack.c.b16 %v1707, %v1705
    %v2150 = vpack.c.b16 %v1708, %v1706
    %v2151 = vpack.c.b16 %v1711, %v1709
    %v2152 = vpack.c.b16 %v1712, %v1710
    %v2153 = vpack.c.b16 %v1715, %v1713
    %v2154 = vpack.c.b16 %v1716, %v1714
    %v2155 = vpack.c.b16 %v1719, %v1717
    %v2156 = vpack.c.b16 %v1720, %v1718
    %v2157 = vpack.c.b16 %v1723, %v1721
    %v2158 = vpack.c.b16 %v1724, %v1722
    %v2159 = vpack.c.b16 %v1727, %v1725
    %v2160 = vpack.c.b16 %v1728, %v1726
    %v2161 = vpack.c.b16 %v1731, %v1729
    %v2162 = vpack.c.b16 %v1732, %v1730
    %v2163 = vpack.c.b16 %v1735, %v1733
    %v2164 = vpack.c.b16 %v1736, %v1734
    %v2165 = vpack.c.b16 %v1739, %v1737
    %v2166 = vpack.c.b16 %v1740, %v1738
    %v2167 = vpack.c.b16 %v1743, %v1741
    %v2168 = vpack.c.b16 %v1744, %v1742
    %v2169 = vpack.c.b16 %v1747, %v1745
    %v2170 = vpack.c.b16 %v1748, %v1746
    %v2171 = vpack.c.b16 %v1751, %v1749
    %v2172 = vpack.c.b16 %v1752, %v1750
    %v2173 = vpack.c.b16 %v1755, %v1753
    %v2174 = vpack.c.b16 %v1756, %v1754
    %v2175 = vpack.c.b16 %v1759, %v1757
    %v2176 = vpack.c.b16 %v1760, %v1758
    %v2177 = vpack.c.b16 %v1763, %v1761
    %v2178 = vpack.c.b16 %v1764, %v1762
    %v2179 = vpack.c.b16 %v1767, %v1765
    %v2180 = vpack.c.b16 %v1768, %v1766
    %v2181 = vpack.c.b16 %v1771, %v1769
    %v2182 = vpack.c.b16 %v1772, %v1770
    %v2183 = vpack.c.b16 %v1775, %v1773
    %v2184 = vpack.c.b16 %v1776, %v1774
    %v2185 = vpack.c.b16 %v1779, %v1777
    %v2186 = vpack.c.b16 %v1780, %v1778
    %v2187 = vpack.c.b16 %v1783, %v1781
    %v2188 = vpack.c.b16 %v1784, %v1782
    %v2189 = vpack.c.b16 %v1787, %v1785
    %v2190 = vpack.c.b16 %v1788, %v1786
    %v2191 = vpack.c.b16 %v1791, %v1789
    %v2192 = vpack.c.b16 %v1792, %v1790
    %v2193 = vpack.c.b16 %v1795, %v1793
    %v2194 = vpack.c.b16 %v1796, %v1794
    %v2195 = vpack.c.b16 %v1799, %v1797
    %v2196 = vpack.c.b16 %v1800, %v1798
    %v2197 = vpack.c.b16 %v1803, %v1801
    %v2198 = vpack.c.b16 %v1804, %v1802
    %v2199 = vpack.c.b16 %v1807, %v1805
    %v2200 = vpack.c.b16 %v1808, %v1806
    %v2201 = vpack.c.b16 %v1811, %v1809
    %v2202 = vpack.c.b16 %v1812, %v1810
    %v2203 = vpack.c.b16 %v1815, %v1813
    %v2204 = vpack.c.b16 %v1816, %v1814
    %v2205 = vpack.c.b16 %v1819, %v1817
    %v2206 = vpack.c.b16 %v1820, %v1818
    %v2207 = vpack.c.b16 %v1823, %v1821
    %v2208 = vpack.c.b16 %v1824, %v1822
    %2593 = vmatprep.subr.bf16.mxu0 %v1826
    %2594 = vmatpush1.bf16.msra.mxu0 %v1825
    %2595 = vmatprep.subr.bf16.mxu0 %v1828
    %2596 = vmatpush1.bf16.msra.mxu0 %v1827
    %2597 = vmatprep.subr.bf16.mxu0 %v1830
    %2598 = vmatpush1.bf16.msra.mxu0 %v1829
    %2599 = vmatprep.subr.bf16.mxu0 %v1832
    %2600 = vmatpush1.bf16.msra.mxu0 %v1831
    %2601 = vmatprep.subr.bf16.mxu0 %v1834
    %2602 = vmatpush1.bf16.msra.mxu0 %v1833
    %2603 = vmatprep.subr.bf16.mxu0 %v1836
    %2604 = vmatpush1.bf16.msra.mxu0 %v1835
    %2605 = vmatprep.subr.bf16.mxu0 %v1838
    %2606 = vmatpush1.bf16.msra.mxu0 %v1837
    %2607 = vmatprep.subr.bf16.mxu0 %v1840
    %2608 = vmatpush1.bf16.msra.mxu0 %v1839
    %2609 = vmatprep.subr.bf16.mxu0 %v1842
    %2610 = vmatpush1.bf16.msra.mxu0 %v1841
    %2611 = vmatprep.subr.bf16.mxu0 %v1844
    %2612 = vmatpush1.bf16.msra.mxu0 %v1843
    %2613 = vmatprep.subr.bf16.mxu0 %v1846
    %2614 = vmatpush1.bf16.msra.mxu0 %v1845
    %2615 = vmatprep.subr.bf16.mxu0 %v1848
    %2616 = vmatpush1.bf16.msra.mxu0 %v1847
    %2617 = vmatprep.subr.bf16.mxu0 %v1850
    %2618 = vmatpush1.bf16.msra.mxu0 %v1849
    %2619 = vmatprep.subr.bf16.mxu0 %v1852
    %2620 = vmatpush1.bf16.msra.mxu0 %v1851
    %2621 = vmatprep.subr.bf16.mxu0 %v1854
    %2622 = vmatpush1.bf16.msra.mxu0 %v1853
    %2623 = vmatprep.subr.bf16.mxu0 %v1856
    %2624 = vmatpush1.bf16.msra.mxu0 %v1855
    %2625 = vmatprep.mubr.bf16.mxu0 %v254
    %2626 = vmatmul.mubr.bf16.gmra.mrb[0].mxu0 %v253
    %v2627 = vpop.f32.mrb[0].mxu0
    %v2628 = vadd.f32 %v666, %v2627
    %v2629 = vpop.f32.mrb[0].mxu0
    %v2630 = vadd.f32 %v670, %v2629
    %v2631 = vpop.f32.mrb[0].mxu0
    %v2632 = vpop.f32.mrb[0].mxu0
    %2633 = vdwg.mxu0
    %2634 = vmatprep.subr.bf16.mxu0 %v1858
    %2635 = vmatpush1.bf16.msra.mxu0 %v1857
    %2636 = vmatprep.subr.bf16.mxu0 %v1860
    %2637 = vmatpush1.bf16.msra.mxu0 %v1859
    %2638 = vmatprep.subr.bf16.mxu0 %v1862
    %2639 = vmatpush1.bf16.msra.mxu0 %v1861
    %2640 = vmatprep.subr.bf16.mxu0 %v1864
    %2641 = vmatpush1.bf16.msra.mxu0 %v1863
    %2642 = vmatprep.subr.bf16.mxu0 %v1866
    %2643 = vmatpush1.bf16.msra.mxu0 %v1865
    %2644 = vmatprep.subr.bf16.mxu0 %v1868
    %2645 = vmatpush1.bf16.msra.mxu0 %v1867
    %2646 = vmatprep.subr.bf16.mxu0 %v1870
    %2647 = vmatpush1.bf16.msra.mxu0 %v1869
    %2648 = vmatprep.subr.bf16.mxu0 %v1872
    %2649 = vmatpush1.bf16.msra.mxu0 %v1871
    %2650 = vmatprep.subr.bf16.mxu0 %v1874
    %2651 = vmatpush1.bf16.msra.mxu0 %v1873
    %2652 = vmatprep.subr.bf16.mxu0 %v1876
    %2653 = vmatpush1.bf16.msra.mxu0 %v1875
    %2654 = vmatprep.subr.bf16.mxu0 %v1878
    %2655 = vmatpush1.bf16.msra.mxu0 %v1877
    %2656 = vmatprep.subr.bf16.mxu0 %v1880
    %2657 = vmatpush1.bf16.msra.mxu0 %v1879
    %2658 = vmatprep.subr.bf16.mxu0 %v1882
    %2659 = vmatpush1.bf16.msra.mxu0 %v1881
    %2660 = vmatprep.subr.bf16.mxu0 %v1884
    %2661 = vmatpush1.bf16.msra.mxu0 %v1883
    %2662 = vmatprep.subr.bf16.mxu0 %v1886
    %2663 = vmatpush1.bf16.msra.mxu0 %v1885
    %2664 = vmatprep.subr.bf16.mxu0 %v1888
    %2665 = vmatpush1.bf16.msra.mxu0 %v1887
    %2666 = vmatprep.mubr.bf16.mxu0 %v256
    %2667 = vmatmul.mubr.bf16.gmra.mrb[0].mxu0 %v255
    %v2668 = vpop.f32.mrb[0].mxu0
    %v2669 = vadd.f32 %v2628, %v2668
    %v2670 = vpop.f32.mrb[0].mxu0
    %v2671 = vadd.f32 %v2630, %v2670
    %v2672 = vpop.f32.mrb[0].mxu0
    %v2673 = vpop.f32.mrb[0].mxu0
    %2674 = vdwg.mxu0
    %2675 = vmatprep.subr.bf16.mxu0 %v1890
    %2676 = vmatpush1.bf16.msra.mxu0 %v1889
    %2677 = vmatprep.subr.bf16.mxu0 %v1892
    %2678 = vmatpush1.bf16.msra.mxu0 %v1891
    %2679 = vmatprep.subr.bf16.mxu0 %v1894
    %2680 = vmatpush1.bf16.msra.mxu0 %v1893
    %2681 = vmatprep.subr.bf16.mxu0 %v1896
    %2682 = vmatpush1.bf16.msra.mxu0 %v1895
    %2683 = vmatprep.subr.bf16.mxu0 %v1898
    %2684 = vmatpush1.bf16.msra.mxu0 %v1897
    %2685 = vmatprep.subr.bf16.mxu0 %v1900
    %2686 = vmatpush1.bf16.msra.mxu0 %v1899
    %2687 = vmatprep.subr.bf16.mxu0 %v1902
    %2688 = vmatpush1.bf16.msra.mxu0 %v1901
    %2689 = vmatprep.subr.bf16.mxu0 %v1904
    %2690 = vmatpush1.bf16.msra.mxu0 %v1903
    %2691 = vmatprep.subr.bf16.mxu0 %v1906
    %2692 = vmatpush1.bf16.msra.mxu0 %v1905
    %2693 = vmatprep.subr.bf16.mxu0 %v1908
    %2694 = vmatpush1.bf16.msra.mxu0 %v1907
    %2695 = vmatprep.subr.bf16.mxu0 %v1910
    %2696 = vmatpush1.bf16.msra.mxu0 %v1909
    %2697 = vmatprep.subr.bf16.mxu0 %v1912
    %2698 = vmatpush1.bf16.msra.mxu0 %v1911
    %2699 = vmatprep.subr.bf16.mxu0 %v1914
    %2700 = vmatpush1.bf16.msra.mxu0 %v1913
    %2701 = vmatprep.subr.bf16.mxu0 %v1916
    %2702 = vmatpush1.bf16.msra.mxu0 %v1915
    %2703 = vmatprep.subr.bf16.mxu0 %v1918
    %2704 = vmatpush1.bf16.msra.mxu0 %v1917
    %2705 = vmatprep.subr.bf16.mxu0 %v1920
    %2706 = vmatpush1.bf16.msra.mxu0 %v1919
    %2707 = vmatprep.mubr.bf16.mxu0 %v258
    %2708 = vmatmul.mubr.bf16.gmra.mrb[0].mxu0 %v257
    %v2709 = vpop.f32.mrb[0].mxu0
    %v2710 = vadd.f32 %v2669, %v2709
    %v2711 = vpop.f32.mrb[0].mxu0
    %v2712 = vadd.f32 %v2671, %v2711
    %v2713 = vpop.f32.mrb[0].mxu0
    %v2714 = vpop.f32.mrb[0].mxu0
    %2715 = vdwg.mxu0
    %2716 = vmatprep.subr.bf16.mxu0 %v1922
    %2717 = vmatpush1.bf16.msra.mxu0 %v1921
    %2718 = vmatprep.subr.bf16.mxu0 %v1924
    %2719 = vmatpush1.bf16.msra.mxu0 %v1923
    %2720 = vmatprep.subr.bf16.mxu0 %v1926
    %2721 = vmatpush1.bf16.msra.mxu0 %v1925
    %2722 = vmatprep.subr.bf16.mxu0 %v1928
    %2723 = vmatpush1.bf16.msra.mxu0 %v1927
    %2724 = vmatprep.subr.bf16.mxu0 %v1930
    %2725 = vmatpush1.bf16.msra.mxu0 %v1929
    %2726 = vmatprep.subr.bf16.mxu0 %v1932
    %2727 = vmatpush1.bf16.msra.mxu0 %v1931
    %2728 = vmatprep.subr.bf16.mxu0 %v1934
    %2729 = vmatpush1.bf16.msra.mxu0 %v1933
    %2730 = vmatprep.subr.bf16.mxu0 %v1936
    %2731 = vmatpush1.bf16.msra.mxu0 %v1935
    %2732 = vmatprep.subr.bf16.mxu0 %v1938
    %2733 = vmatpush1.bf16.msra.mxu0 %v1937
    %2734 = vmatprep.subr.bf16.mxu0 %v1940
    %2735 = vmatpush1.bf16.msra.mxu0 %v1939
    %2736 = vmatprep.subr.bf16.mxu0 %v1942
    %2737 = vmatpush1.bf16.msra.mxu0 %v1941
    %2738 = vmatprep.subr.bf16.mxu0 %v1944
    %2739 = vmatpush1.bf16.msra.mxu0 %v1943
    %2740 = vmatprep.subr.bf16.mxu0 %v1946
    %2741 = vmatpush1.bf16.msra.mxu0 %v1945
    %2742 = vmatprep.subr.bf16.mxu0 %v1948
    %2743 = vmatpush1.bf16.msra.mxu0 %v1947
    %2744 = vmatprep.subr.bf16.mxu0 %v1950
    %2745 = vmatpush1.bf16.msra.mxu0 %v1949
    %2746 = vmatprep.subr.bf16.mxu0 %v1952
    %2747 = vmatpush1.bf16.msra.mxu0 %v1951
    %2748 = vmatprep.mubr.bf16.mxu0 %v260
    %2749 = vmatmul.mubr.bf16.gmra.mrb[0].mxu0 %v259
    %v2750 = vpop.f32.mrb[0].mxu0
    %v2751 = vadd.f32 %v2710, %v2750
    %v2752 = vpop.f32.mrb[0].mxu0
    %v2753 = vadd.f32 %v2712, %v2752
    %v2754 = vpop.f32.mrb[0].mxu0
    %v2755 = vpop.f32.mrb[0].mxu0
    %2756 = vdwg.mxu0
    %2757 = vmatprep.subr.bf16.mxu0 %v1954
    %2758 = vmatpush1.bf16.msra.mxu0 %v1953
    %2759 = vmatprep.subr.bf16.mxu0 %v1956
    %2760 = vmatpush1.bf16.msra.mxu0 %v1955
    %2761 = vmatprep.subr.bf16.mxu0 %v1958
    %2762 = vmatpush1.bf16.msra.mxu0 %v1957
    %2763 = vmatprep.subr.bf16.mxu0 %v1960
    %2764 = vmatpush1.bf16.msra.mxu0 %v1959
    %2765 = vmatprep.subr.bf16.mxu0 %v1962
    %2766 = vmatpush1.bf16.msra.mxu0 %v1961
    %2767 = vmatprep.subr.bf16.mxu0 %v1964
    %2768 = vmatpush1.bf16.msra.mxu0 %v1963
    %2769 = vmatprep.subr.bf16.mxu0 %v1966
    %2770 = vmatpush1.bf16.msra.mxu0 %v1965
    %2771 = vmatprep.subr.bf16.mxu0 %v1968
    %2772 = vmatpush1.bf16.msra.mxu0 %v1967
    %2773 = vmatprep.subr.bf16.mxu0 %v1970
    %2774 = vmatpush1.bf16.msra.mxu0 %v1969
    %2775 = vmatprep.subr.bf16.mxu0 %v1972
    %2776 = vmatpush1.bf16.msra.mxu0 %v1971
    %2777 = vmatprep.subr.bf16.mxu0 %v1974
    %2778 = vmatpush1.bf16.msra.mxu0 %v1973
    %2779 = vmatprep.subr.bf16.mxu0 %v1976
    %2780 = vmatpush1.bf16.msra.mxu0 %v1975
    %2781 = vmatprep.subr.bf16.mxu0 %v1978
    %2782 = vmatpush1.bf16.msra.mxu0 %v1977
    %2783 = vmatprep.subr.bf16.mxu0 %v1980
    %2784 = vmatpush1.bf16.msra.mxu0 %v1979
    %2785 = vmatprep.subr.bf16.mxu0 %v1982
    %2786 = vmatpush1.bf16.msra.mxu0 %v1981
    %2787 = vmatprep.subr.bf16.mxu0 %v1984
    %2788 = vmatpush1.bf16.msra.mxu0 %v1983
    %2789 = vmatprep.mubr.bf16.mxu0 %v262
    %2790 = vmatmul.mubr.bf16.gmra.mrb[0].mxu0 %v261
    %v2791 = vpop.f32.mrb[0].mxu0
    %v2792 = vadd.f32 %v2751, %v2791
    %v2793 = vpop.f32.mrb[0].mxu0
    %v2794 = vadd.f32 %v2753, %v2793
    %v2795 = vpop.f32.mrb[0].mxu0
    %v2796 = vpop.f32.mrb[0].mxu0
    %2797 = vdwg.mxu0
    %2798 = vmatprep.subr.bf16.mxu0 %v1986
    %2799 = vmatpush1.bf16.msra.mxu0 %v1985
    %2800 = vmatprep.subr.bf16.mxu0 %v1988
    %2801 = vmatpush1.bf16.msra.mxu0 %v1987
    %2802 = vmatprep.subr.bf16.mxu0 %v1990
    %2803 = vmatpush1.bf16.msra.mxu0 %v1989
    %2804 = vmatprep.subr.bf16.mxu0 %v1992
    %2805 = vmatpush1.bf16.msra.mxu0 %v1991
    %2806 = vmatprep.subr.bf16.mxu0 %v1994
    %2807 = vmatpush1.bf16.msra.mxu0 %v1993
    %2808 = vmatprep.subr.bf16.mxu0 %v1996
    %2809 = vmatpush1.bf16.msra.mxu0 %v1995
    %2810 = vmatprep.subr.bf16.mxu0 %v1998
    %2811 = vmatpush1.bf16.msra.mxu0 %v1997
    %2812 = vmatprep.subr.bf16.mxu0 %v2000
    %2813 = vmatpush1.bf16.msra.mxu0 %v1999
    %2814 = vmatprep.subr.bf16.mxu0 %v2002
    %2815 = vmatpush1.bf16.msra.mxu0 %v2001
    %2816 = vmatprep.subr.bf16.mxu0 %v2004
    %2817 = vmatpush1.bf16.msra.mxu0 %v2003
    %2818 = vmatprep.subr.bf16.mxu0 %v2006
    %2819 = vmatpush1.bf16.msra.mxu0 %v2005
    %2820 = vmatprep.subr.bf16.mxu0 %v2008
    %2821 = vmatpush1.bf16.msra.mxu0 %v2007
    %2822 = vmatprep.subr.bf16.mxu0 %v2010
    %2823 = vmatpush1.bf16.msra.mxu0 %v2009
    %2824 = vmatprep.subr.bf16.mxu0 %v2012
    %2825 = vmatpush1.bf16.msra.mxu0 %v2011
    %2826 = vmatprep.subr.bf16.mxu0 %v2014
    %2827 = vmatpush1.bf16.msra.mxu0 %v2013
    %2828 = vmatprep.subr.bf16.mxu0 %v2016
    %2829 = vmatpush1.bf16.msra.mxu0 %v2015
    %2830 = vmatprep.mubr.bf16.mxu0 %v264
    %2831 = vmatmul.mubr.bf16.gmra.mrb[0].mxu0 %v263
    %v2832 = vpop.f32.mrb[0].mxu0
    %v2833 = vadd.f32 %v2792, %v2832
    %v2834 = vpop.f32.mrb[0].mxu0
    %v2835 = vadd.f32 %v2794, %v2834
    %v2836 = vpop.f32.mrb[0].mxu0
    %v2837 = vpop.f32.mrb[0].mxu0
    %2838 = vdwg.mxu0
    %2839 = vmatprep.subr.bf16.mxu0 %v2018
    %2840 = vmatpush1.bf16.msra.mxu0 %v2017
    %2841 = vmatprep.subr.bf16.mxu0 %v2020
    %2842 = vmatpush1.bf16.msra.mxu0 %v2019
    %2843 = vmatprep.subr.bf16.mxu0 %v2022
    %2844 = vmatpush1.bf16.msra.mxu0 %v2021
    %2845 = vmatprep.subr.bf16.mxu0 %v2024
    %2846 = vmatpush1.bf16.msra.mxu0 %v2023
    %2847 = vmatprep.subr.bf16.mxu0 %v2026
    %2848 = vmatpush1.bf16.msra.mxu0 %v2025
    %2849 = vmatprep.subr.bf16.mxu0 %v2028
    %2850 = vmatpush1.bf16.msra.mxu0 %v2027
    %2851 = vmatprep.subr.bf16.mxu0 %v2030
    %2852 = vmatpush1.bf16.msra.mxu0 %v2029
    %2853 = vmatprep.subr.bf16.mxu0 %v2032
    %2854 = vmatpush1.bf16.msra.mxu0 %v2031
    %2855 = vmatprep.subr.bf16.mxu0 %v2034
    %2856 = vmatpush1.bf16.msra.mxu0 %v2033
    %2857 = vmatprep.subr.bf16.mxu0 %v2036
    %2858 = vmatpush1.bf16.msra.mxu0 %v2035
    %2859 = vmatprep.subr.bf16.mxu0 %v2038
    %2860 = vmatpush1.bf16.msra.mxu0 %v2037
    %2861 = vmatprep.subr.bf16.mxu0 %v2040
    %2862 = vmatpush1.bf16.msra.mxu0 %v2039
    %2863 = vmatprep.subr.bf16.mxu0 %v2042
    %2864 = vmatpush1.bf16.msra.mxu0 %v2041
    %2865 = vmatprep.subr.bf16.mxu0 %v2044
    %2866 = vmatpush1.bf16.msra.mxu0 %v2043
    %2867 = vmatprep.subr.bf16.mxu0 %v2046
    %2868 = vmatpush1.bf16.msra.mxu0 %v2045
    %2869 = vmatprep.subr.bf16.mxu0 %v2048
    %2870 = vmatpush1.bf16.msra.mxu0 %v2047
    %2871 = vmatprep.mubr.bf16.mxu0 %v266
    %2872 = vmatmul.mubr.bf16.gmra.mrb[0].mxu0 %v265
    %v2873 = vpop.f32.mrb[0].mxu0
    %v2874 = vadd.f32 %v2833, %v2873
    %v2875 = vpop.f32.mrb[0].mxu0
    %v2876 = vadd.f32 %v2835, %v2875
    %v2877 = vpop.f32.mrb[0].mxu0
    %v2878 = vpop.f32.mrb[0].mxu0
    %2879 = vdwg.mxu0
    %2880 = vmatprep.subr.bf16.mxu0 %v2050
    %2881 = vmatpush1.bf16.msra.mxu0 %v2049
    %2882 = vmatprep.subr.bf16.mxu0 %v2052
    %2883 = vmatpush1.bf16.msra.mxu0 %v2051
    %2884 = vmatprep.subr.bf16.mxu0 %v2054
    %2885 = vmatpush1.bf16.msra.mxu0 %v2053
    %2886 = vmatprep.subr.bf16.mxu0 %v2056
    %2887 = vmatpush1.bf16.msra.mxu0 %v2055
    %2888 = vmatprep.subr.bf16.mxu0 %v2058
    %2889 = vmatpush1.bf16.msra.mxu0 %v2057
    %2890 = vmatprep.subr.bf16.mxu0 %v2060
    %2891 = vmatpush1.bf16.msra.mxu0 %v2059
    %2892 = vmatprep.subr.bf16.mxu0 %v2062
    %2893 = vmatpush1.bf16.msra.mxu0 %v2061
    %2894 = vmatprep.subr.bf16.mxu0 %v2064
    %2895 = vmatpush1.bf16.msra.mxu0 %v2063
    %2896 = vmatprep.subr.bf16.mxu0 %v2066
    %2897 = vmatpush1.bf16.msra.mxu0 %v2065
    %2898 = vmatprep.subr.bf16.mxu0 %v2068
    %2899 = vmatpush1.bf16.msra.mxu0 %v2067
    %2900 = vmatprep.subr.bf16.mxu0 %v2070
    %2901 = vmatpush1.bf16.msra.mxu0 %v2069
    %2902 = vmatprep.subr.bf16.mxu0 %v2072
    %2903 = vmatpush1.bf16.msra.mxu0 %v2071
    %2904 = vmatprep.subr.bf16.mxu0 %v2074
    %2905 = vmatpush1.bf16.msra.mxu0 %v2073
    %2906 = vmatprep.subr.bf16.mxu0 %v2076
    %2907 = vmatpush1.bf16.msra.mxu0 %v2075
    %2908 = vmatprep.subr.bf16.mxu0 %v2078
    %2909 = vmatpush1.bf16.msra.mxu0 %v2077
    %2910 = vmatprep.subr.bf16.mxu0 %v2080
    %2911 = vmatpush1.bf16.msra.mxu0 %v2079
    %2912 = vmatprep.mubr.bf16.mxu0 %v268
    %2913 = vmatmul.mubr.bf16.gmra.mrb[0].mxu0 %v267
    %v2914 = vpop.f32.mrb[0].mxu0
    %v2915 = vadd.f32 %v2874, %v2914
    %v2916 = vpop.f32.mrb[0].mxu0
    %v2917 = vadd.f32 %v2876, %v2916
    %v2918 = vpop.f32.mrb[0].mxu0
    %v2919 = vpop.f32.mrb[0].mxu0
    %2920 = vdwg.mxu0
    %2921 = vmatprep.subr.bf16.mxu0 %v2082
    %2922 = vmatpush1.bf16.msra.mxu0 %v2081
    %2923 = vmatprep.subr.bf16.mxu0 %v2084
    %2924 = vmatpush1.bf16.msra.mxu0 %v2083
    %2925 = vmatprep.subr.bf16.mxu0 %v2086
    %2926 = vmatpush1.bf16.msra.mxu0 %v2085
    %2927 = vmatprep.subr.bf16.mxu0 %v2088
    %2928 = vmatpush1.bf16.msra.mxu0 %v2087
    %2929 = vmatprep.subr.bf16.mxu0 %v2090
    %2930 = vmatpush1.bf16.msra.mxu0 %v2089
    %2931 = vmatprep.subr.bf16.mxu0 %v2092
    %2932 = vmatpush1.bf16.msra.mxu0 %v2091
    %2933 = vmatprep.subr.bf16.mxu0 %v2094
    %2934 = vmatpush1.bf16.msra.mxu0 %v2093
    %2935 = vmatprep.subr.bf16.mxu0 %v2096
    %2936 = vmatpush1.bf16.msra.mxu0 %v2095
    %2937 = vmatprep.subr.bf16.mxu0 %v2098
    %2938 = vmatpush1.bf16.msra.mxu0 %v2097
    %2939 = vmatprep.subr.bf16.mxu0 %v2100
    %2940 = vmatpush1.bf16.msra.mxu0 %v2099
    %2941 = vmatprep.subr.bf16.mxu0 %v2102
    %2942 = vmatpush1.bf16.msra.mxu0 %v2101
    %2943 = vmatprep.subr.bf16.mxu0 %v2104
    %2944 = vmatpush1.bf16.msra.mxu0 %v2103
    %2945 = vmatprep.subr.bf16.mxu0 %v2106
    %2946 = vmatpush1.bf16.msra.mxu0 %v2105
    %2947 = vmatprep.subr.bf16.mxu0 %v2108
    %2948 = vmatpush1.bf16.msra.mxu0 %v2107
    %2949 = vmatprep.subr.bf16.mxu0 %v2110
    %2950 = vmatpush1.bf16.msra.mxu0 %v2109
    %2951 = vmatprep.subr.bf16.mxu0 %v2112
    %2952 = vmatpush1.bf16.msra.mxu0 %v2111
    %2953 = vmatprep.mubr.bf16.mxu0 %v270
    %2954 = vmatmul.mubr.bf16.gmra.mrb[0].mxu0 %v269
    %v2955 = vpop.f32.mrb[0].mxu0
    %v2956 = vadd.f32 %v2915, %v2955
    %v2957 = vpop.f32.mrb[0].mxu0
    %v2958 = vadd.f32 %v2917, %v2957
    %v2959 = vpop.f32.mrb[0].mxu0
    %v2960 = vpop.f32.mrb[0].mxu0
    %2961 = vdwg.mxu0
    %2962 = vmatprep.subr.bf16.mxu0 %v2114
    %2963 = vmatpush1.bf16.msra.mxu0 %v2113
    %2964 = vmatprep.subr.bf16.mxu0 %v2116
    %2965 = vmatpush1.bf16.msra.mxu0 %v2115
    %2966 = vmatprep.subr.bf16.mxu0 %v2118
    %2967 = vmatpush1.bf16.msra.mxu0 %v2117
    %2968 = vmatprep.subr.bf16.mxu0 %v2120
    %2969 = vmatpush1.bf16.msra.mxu0 %v2119
    %2970 = vmatprep.subr.bf16.mxu0 %v2122
    %2971 = vmatpush1.bf16.msra.mxu0 %v2121
    %2972 = vmatprep.subr.bf16.mxu0 %v2124
    %2973 = vmatpush1.bf16.msra.mxu0 %v2123
    %2974 = vmatprep.subr.bf16.mxu0 %v2126
    %2975 = vmatpush1.bf16.msra.mxu0 %v2125
    %2976 = vmatprep.subr.bf16.mxu0 %v2128
    %2977 = vmatpush1.bf16.msra.mxu0 %v2127
    %2978 = vmatprep.subr.bf16.mxu0 %v2130
    %2979 = vmatpush1.bf16.msra.mxu0 %v2129
    %2980 = vmatprep.subr.bf16.mxu0 %v2132
    %2981 = vmatpush1.bf16.msra.mxu0 %v2131
    %2982 = vmatprep.subr.bf16.mxu0 %v2134
    %2983 = vmatpush1.bf16.msra.mxu0 %v2133
    %2984 = vmatprep.subr.bf16.mxu0 %v2136
    %2985 = vmatpush1.bf16.msra.mxu0 %v2135
    %2986 = vmatprep.subr.bf16.mxu0 %v2138
    %2987 = vmatpush1.bf16.msra.mxu0 %v2137
    %2988 = vmatprep.subr.bf16.mxu0 %v2140
    %2989 = vmatpush1.bf16.msra.mxu0 %v2139
    %2990 = vmatprep.subr.bf16.mxu0 %v2142
    %2991 = vmatpush1.bf16.msra.mxu0 %v2141
    %2992 = vmatprep.subr.bf16.mxu0 %v2144
    %2993 = vmatpush1.bf16.msra.mxu0 %v2143
    %2994 = vmatprep.mubr.bf16.mxu0 %v272
    %2995 = vmatmul.mubr.bf16.gmra.mrb[0].mxu0 %v271
    %v2996 = vpop.f32.mrb[0].mxu0
    %v2997 = vadd.f32 %v2956, %v2996
    %v2998 = vpop.f32.mrb[0].mxu0
    %v2999 = vadd.f32 %v2958, %v2998
    %v3000 = vpop.f32.mrb[0].mxu0
    %v3001 = vpop.f32.mrb[0].mxu0
    %3002 = vdwg.mxu0
    %3003 = vmatprep.subr.bf16.mxu0 %v2146
    %3004 = vmatpush1.bf16.msra.mxu0 %v2145
    %3005 = vmatprep.subr.bf16.mxu0 %v2148
    %3006 = vmatpush1.bf16.msra.mxu0 %v2147
    %3007 = vmatprep.subr.bf16.mxu0 %v2150
    %3008 = vmatpush1.bf16.msra.mxu0 %v2149
    %3009 = vmatprep.subr.bf16.mxu0 %v2152
    %3010 = vmatpush1.bf16.msra.mxu0 %v2151
    %3011 = vmatprep.subr.bf16.mxu0 %v2154
    %3012 = vmatpush1.bf16.msra.mxu0 %v2153
    %3013 = vmatprep.subr.bf16.mxu0 %v2156
    %3014 = vmatpush1.bf16.msra.mxu0 %v2155
    %3015 = vmatprep.subr.bf16.mxu0 %v2158
    %3016 = vmatpush1.bf16.msra.mxu0 %v2157
    %3017 = vmatprep.subr.bf16.mxu0 %v2160
    %3018 = vmatpush1.bf16.msra.mxu0 %v2159
    %3019 = vmatprep.subr.bf16.mxu0 %v2162
    %3020 = vmatpush1.bf16.msra.mxu0 %v2161
    %3021 = vmatprep.subr.bf16.mxu0 %v2164
    %3022 = vmatpush1.bf16.msra.mxu0 %v2163
    %3023 = vmatprep.subr.bf16.mxu0 %v2166
    %3024 = vmatpush1.bf16.msra.mxu0 %v2165
    %3025 = vmatprep.subr.bf16.mxu0 %v2168
    %3026 = vmatpush1.bf16.msra.mxu0 %v2167
    %3027 = vmatprep.subr.bf16.mxu0 %v2170
    %3028 = vmatpush1.bf16.msra.mxu0 %v2169
    %3029 = vmatprep.subr.bf16.mxu0 %v2172
    %3030 = vmatpush1.bf16.msra.mxu0 %v2171
    %3031 = vmatprep.subr.bf16.mxu0 %v2174
    %3032 = vmatpush1.bf16.msra.mxu0 %v2173
    %3033 = vmatprep.subr.bf16.mxu0 %v2176
    %3034 = vmatpush1.bf16.msra.mxu0 %v2175
    %3035 = vmatprep.mubr.bf16.mxu0 %v274
    %3036 = vmatmul.mubr.bf16.gmra.mrb[0].mxu0 %v273
    %v3037 = vpop.f32.mrb[0].mxu0
    %v3038 = vadd.f32 %v2997, %v3037
    %v3039 = vpop.f32.mrb[0].mxu0
    %v3040 = vadd.f32 %v2999, %v3039
    %v3041 = vpop.f32.mrb[0].mxu0
    %v3042 = vpop.f32.mrb[0].mxu0
    %3043 = vdwg.mxu0
    %3044 = vmatprep.subr.bf16.mxu0 %v2178
    %3045 = vmatpush1.bf16.msra.mxu0 %v2177
    %3046 = vmatprep.subr.bf16.mxu0 %v2180
    %3047 = vmatpush1.bf16.msra.mxu0 %v2179
    %3048 = vmatprep.subr.bf16.mxu0 %v2182
    %3049 = vmatpush1.bf16.msra.mxu0 %v2181
    %3050 = vmatprep.subr.bf16.mxu0 %v2184
    %3051 = vmatpush1.bf16.msra.mxu0 %v2183
    %3052 = vmatprep.subr.bf16.mxu0 %v2186
    %3053 = vmatpush1.bf16.msra.mxu0 %v2185
    %3054 = vmatprep.subr.bf16.mxu0 %v2188
    %3055 = vmatpush1.bf16.msra.mxu0 %v2187
    %3056 = vmatprep.subr.bf16.mxu0 %v2190
    %3057 = vmatpush1.bf16.msra.mxu0 %v2189
    %3058 = vmatprep.subr.bf16.mxu0 %v2192
    %3059 = vmatpush1.bf16.msra.mxu0 %v2191
    %3060 = vmatprep.subr.bf16.mxu0 %v2194
    %3061 = vmatpush1.bf16.msra.mxu0 %v2193
    %3062 = vmatprep.subr.bf16.mxu0 %v2196
    %3063 = vmatpush1.bf16.msra.mxu0 %v2195
    %3064 = vmatprep.subr.bf16.mxu0 %v2198
    %3065 = vmatpush1.bf16.msra.mxu0 %v2197
    %3066 = vmatprep.subr.bf16.mxu0 %v2200
    %3067 = vmatpush1.bf16.msra.mxu0 %v2199
    %3068 = vmatprep.subr.bf16.mxu0 %v2202
    %3069 = vmatpush1.bf16.msra.mxu0 %v2201
    %3070 = vmatprep.subr.bf16.mxu0 %v2204
    %3071 = vmatpush1.bf16.msra.mxu0 %v2203
    %3072 = vmatprep.subr.bf16.mxu0 %v2206
    %3073 = vmatpush1.bf16.msra.mxu0 %v2205
    %3074 = vmatprep.subr.bf16.mxu0 %v2208
    %3075 = vmatpush1.bf16.msra.mxu0 %v2207
    %3076 = vmatprep.mubr.bf16.mxu0 %v276
    %3077 = vmatmul.mubr.bf16.gmra.mrb[0].mxu0 %v275
    %v3078 = vpop.f32.mrb[0].mxu0
    %v3079 = vadd.f32 %v3038, %v3078
    %v3080 = vpop.f32.mrb[0].mxu0
    %v3081 = vadd.f32 %v3040, %v3080
    %v3082 = vpop.f32.mrb[0].mxu0
    %v3083 = vpop.f32.mrb[0].mxu0
    %3084 = vdwg.mxu0
    %v3085 = vmax.f32 %v3079, 0.0
    %v3086 = vmax.f32 %v3081, 0.0
    %v3087 = vpack.c.bf16 %v3085, %v3085
    %v3088 = vpack.c.bf16 %v3086, %v3086
    %v3089 = vld [vmem:[#allocation8] sm:$0xf]
    %v3090 = vld [vmem:[#allocation8 + $0x4] sm:$0xf]
    %v3091 = vld [vmem:[#allocation8 + $0x8] sm:$0xf]
    %v3092 = vld [vmem:[#allocation8 + $0xc] sm:$0xf]
    %v3093 = vld [vmem:[#allocation8 + $0x10] sm:$0xf]
    %v3094 = vld [vmem:[#allocation8 + $0x14] sm:$0xf]
    %v3095 = vld [vmem:[#allocation8 + $0x18] sm:$0xf]
    %v3096 = vld [vmem:[#allocation8 + $0x1c] sm:$0xf]
    %v3097 = vld [vmem:[#allocation8 + $0x20] sm:$0xf]
    %v3098 = vld [vmem:[#allocation8 + $0x24] sm:$0xf]
    %v3099 = vld [vmem:[#allocation8 + $0x28] sm:$0xf]
    %v3100 = vld [vmem:[#allocation8 + $0x2c] sm:$0xf]
    %v3101 = vld [vmem:[#allocation8 + $0x30] sm:$0xf]
    %v3102 = vld [vmem:[#allocation8 + $0x34] sm:$0xf]
    %v3103 = vld [vmem:[#allocation8 + $0x38] sm:$0xf]
    %v3104 = vld [vmem:[#allocation8 + $0x3c] sm:$0xf]
    %v3105 = vld [vmem:[#allocation8 + $0x40] sm:$0xf]
    %v3106 = vld [vmem:[#allocation8 + $0x44] sm:$0xf]
    %v3107 = vld [vmem:[#allocation8 + $0x48] sm:$0xf]
    %v3108 = vld [vmem:[#allocation8 + $0x4c] sm:$0xf]
    %v3109 = vld [vmem:[#allocation8 + $0x50] sm:$0xf]
    %v3110 = vld [vmem:[#allocation8 + $0x54] sm:$0xf]
    %v3111 = vld [vmem:[#allocation8 + $0x58] sm:$0xf]
    %v3112 = vld [vmem:[#allocation8 + $0x5c] sm:$0xf]
    %v3113 = vld [vmem:[#allocation8 + $0x60] sm:$0xf]
    %v3114 = vld [vmem:[#allocation8 + $0x64] sm:$0xf]
    %v3115 = vld [vmem:[#allocation8 + $0x68] sm:$0xf]
    %v3116 = vld [vmem:[#allocation8 + $0x6c] sm:$0xf]
    %v3117 = vld [vmem:[#allocation8 + $0x70] sm:$0xf]
    %v3118 = vld [vmem:[#allocation8 + $0x74] sm:$0xf]
    %v3119 = vld [vmem:[#allocation8 + $0x78] sm:$0xf]
    %v3120 = vld [vmem:[#allocation8 + $0x7c] sm:$0xf]
    %v3121 = vld [vmem:[#allocation10] sm:$0x1]
    %v3123 = vlaneseq
    %v3124 = vshrl.u32 %v3123, 7
    %v3125 = vsub.s32 0, %v3124
    %v3126 = vrot.slane %v3121, %v3125
    %v3160 = vunpack.c.l.b16 %v3089
    %v3161 = vunpack.c.l.b16 %v3090
    %v3162 = vunpack.c.l.b16 %v3091
    %v3163 = vunpack.c.l.b16 %v3092
    %v3164 = vunpack.c.l.b16 %v3093
    %v3165 = vunpack.c.l.b16 %v3094
    %v3166 = vunpack.c.l.b16 %v3095
    %v3167 = vunpack.c.l.b16 %v3096
    %v3168 = vunpack.c.l.b16 %v3097
    %v3169 = vunpack.c.l.b16 %v3098
    %v3170 = vunpack.c.l.b16 %v3099
    %v3171 = vunpack.c.l.b16 %v3100
    %v3172 = vunpack.c.l.b16 %v3101
    %v3173 = vunpack.c.l.b16 %v3102
    %v3174 = vunpack.c.l.b16 %v3103
    %v3175 = vunpack.c.l.b16 %v3104
    %v3176 = vunpack.c.l.b16 %v3105
    %v3177 = vunpack.c.l.b16 %v3106
    %v3178 = vunpack.c.l.b16 %v3107
    %v3179 = vunpack.c.l.b16 %v3108
    %v3180 = vunpack.c.l.b16 %v3109
    %v3181 = vunpack.c.l.b16 %v3110
    %v3182 = vunpack.c.l.b16 %v3111
    %v3183 = vunpack.c.l.b16 %v3112
    %v3184 = vunpack.c.l.b16 %v3113
    %v3185 = vunpack.c.l.b16 %v3114
    %v3186 = vunpack.c.l.b16 %v3115
    %v3187 = vunpack.c.l.b16 %v3116
    %v3188 = vunpack.c.l.b16 %v3117
    %v3189 = vunpack.c.l.b16 %v3118
    %v3190 = vunpack.c.l.b16 %v3119
    %v3191 = vunpack.c.l.b16 %v3120
    %v3192 = vpack.c.b16 %v3161, %v3160
    %v3193 = vpack.c.b16 %v3163, %v3162
    %v3194 = vpack.c.b16 %v3165, %v3164
    %v3195 = vpack.c.b16 %v3167, %v3166
    %v3196 = vpack.c.b16 %v3169, %v3168
    %v3197 = vpack.c.b16 %v3171, %v3170
    %v3198 = vpack.c.b16 %v3173, %v3172
    %v3199 = vpack.c.b16 %v3175, %v3174
    %v3200 = vpack.c.b16 %v3177, %v3176
    %v3201 = vpack.c.b16 %v3179, %v3178
    %v3202 = vpack.c.b16 %v3181, %v3180
    %v3203 = vpack.c.b16 %v3183, %v3182
    %v3204 = vpack.c.b16 %v3185, %v3184
    %v3205 = vpack.c.b16 %v3187, %v3186
    %v3206 = vpack.c.b16 %v3189, %v3188
    %v3207 = vpack.c.b16 %v3191, %v3190
    %3224 = vmatprep.subr.bf16.mxu0 0
    %3225 = vmatpush1.bf16.msra.mxu0 %v3192
    %3226 = vmatprep.subr.bf16.mxu0 0
    %3227 = vmatpush1.bf16.msra.mxu0 %v3193
    %3228 = vmatprep.subr.bf16.mxu0 0
    %3229 = vmatpush1.bf16.msra.mxu0 %v3194
    %3230 = vmatprep.subr.bf16.mxu0 0
    %3231 = vmatpush1.bf16.msra.mxu0 %v3195
    %3232 = vmatprep.subr.bf16.mxu0 0
    %3233 = vmatpush1.bf16.msra.mxu0 %v3196
    %3234 = vmatprep.subr.bf16.mxu0 0
    %3235 = vmatpush1.bf16.msra.mxu0 %v3197
    %3236 = vmatprep.subr.bf16.mxu0 0
    %3237 = vmatpush1.bf16.msra.mxu0 %v3198
    %3238 = vmatprep.subr.bf16.mxu0 0
    %3239 = vmatpush1.bf16.msra.mxu0 %v3199
    %3240 = vmatprep.subr.bf16.mxu0 0
    %3241 = vmatpush1.bf16.msra.mxu0 %v3200
    %3242 = vmatprep.subr.bf16.mxu0 0
    %3243 = vmatpush1.bf16.msra.mxu0 %v3201
    %3244 = vmatprep.subr.bf16.mxu0 0
    %3245 = vmatpush1.bf16.msra.mxu0 %v3202
    %3246 = vmatprep.subr.bf16.mxu0 0
    %3247 = vmatpush1.bf16.msra.mxu0 %v3203
    %3248 = vmatprep.subr.bf16.mxu0 0
    %3249 = vmatpush1.bf16.msra.mxu0 %v3204
    %3250 = vmatprep.subr.bf16.mxu0 0
    %3251 = vmatpush1.bf16.msra.mxu0 %v3205
    %3252 = vmatprep.subr.bf16.mxu0 0
    %3253 = vmatpush1.bf16.msra.mxu0 %v3206
    %3254 = vmatprep.subr.bf16.mxu0 0
    %3255 = vmatpush1.bf16.msra.mxu0 %v3207
    %3256 = vmatprep.mubr.bf16.mxu0 %v3088
    %3257 = vmatmul.mubr.bf16.gmra.mrb[0].mxu0 %v3087
    %v3258 = vpop.f32.mrb[0].mxu0
    %v3259 = vadd.f32 %v3126, %v3258
    %v3260 = vpop.f32.mrb[0].mxu0
    %v3261 = vpop.f32.mrb[0].mxu0
    %v3262 = vpop.f32.mrb[0].mxu0
    %3263 = vdwg.mxu0
    %v3264 = vmax.f32 %v3259, 0.0
    %v3265 = vpack.c.bf16 %v3264, %v3264
    %v3266 = vld [vmem:[#allocation11] sm:$0xf]
    %v3267 = vld [vmem:[#allocation11 + $0x4] sm:$0xf]
    %v3268 = vld [vmem:[#allocation11 + $0x8] sm:$0xf]
    %v3269 = vld [vmem:[#allocation11 + $0xc] sm:$0xf]
    %v3270 = vld [vmem:[#allocation11 + $0x10] sm:$0xf]
    %v3271 = vld [vmem:[#allocation11 + $0x14] sm:$0xf]
    %v3272 = vld [vmem:[#allocation11 + $0x18] sm:$0xf]
    %v3273 = vld [vmem:[#allocation11 + $0x1c] sm:$0xf]
    %v3274 = vld [vmem:[#allocation11 + $0x20] sm:$0xf]
    %v3275 = vld [vmem:[#allocation11 + $0x24] sm:$0xf]
    %v3276 = vld [vmem:[#allocation11 + $0x28] sm:$0xf]
    %v3277 = vld [vmem:[#allocation11 + $0x2c] sm:$0xf]
    %v3278 = vld [vmem:[#allocation11 + $0x30] sm:$0xf]
    %v3279 = vld [vmem:[#allocation11 + $0x34] sm:$0xf]
    %v3280 = vld [vmem:[#allocation11 + $0x38] sm:$0xf]
    %v3281 = vld [vmem:[#allocation11 + $0x3c] sm:$0xf]
    %v3282 = vld [vmem:[#allocation13] sm:$0x1]
    %v3284 = vlaneseq
    %v3285 = vshrl.u32 %v3284, 7
    %v3286 = vsub.s32 0, %v3285
    %v3287 = vrot.slane %v3282, %v3286
    %v3305 = vunpack.c.l.b16 %v3266
    %v3306 = vunpack.c.l.b16 %v3267
    %v3307 = vunpack.c.l.b16 %v3268
    %v3308 = vunpack.c.l.b16 %v3269
    %v3309 = vunpack.c.l.b16 %v3270
    %v3310 = vunpack.c.l.b16 %v3271
    %v3311 = vunpack.c.l.b16 %v3272
    %v3312 = vunpack.c.l.b16 %v3273
    %v3313 = vunpack.c.l.b16 %v3274
    %v3314 = vunpack.c.l.b16 %v3275
    %v3315 = vunpack.c.l.b16 %v3276
    %v3316 = vunpack.c.l.b16 %v3277
    %v3317 = vunpack.c.l.b16 %v3278
    %v3318 = vunpack.c.l.b16 %v3279
    %v3319 = vunpack.c.l.b16 %v3280
    %v3320 = vunpack.c.l.b16 %v3281
    %v3321 = vpack.c.b16 %v3306, %v3305
    %v3322 = vpack.c.b16 %v3308, %v3307
    %v3323 = vpack.c.b16 %v3310, %v3309
    %v3324 = vpack.c.b16 %v3312, %v3311
    %v3325 = vpack.c.b16 %v3314, %v3313
    %v3326 = vpack.c.b16 %v3316, %v3315
    %v3327 = vpack.c.b16 %v3318, %v3317
    %v3328 = vpack.c.b16 %v3320, %v3319
    %3337 = vmatprep.subr.bf16.mxu0 0
    %3338 = vmatpush1.bf16.msra.mxu0 %v3321
    %3339 = vmatprep.subr.bf16.mxu0 0
    %3340 = vmatpush1.bf16.msra.mxu0 %v3322
    %3341 = vmatprep.subr.bf16.mxu0 0
    %3342 = vmatpush1.bf16.msra.mxu0 %v3323
    %3343 = vmatprep.subr.bf16.mxu0 0
    %3344 = vmatpush1.bf16.msra.mxu0 %v3324
    %3345 = vmatprep.subr.bf16.mxu0 0
    %3346 = vmatpush1.bf16.msra.mxu0 %v3325
    %3347 = vmatprep.subr.bf16.mxu0 0
    %3348 = vmatpush1.bf16.msra.mxu0 %v3326
    %3349 = vmatprep.subr.bf16.mxu0 0
    %3350 = vmatpush1.bf16.msra.mxu0 %v3327
    %3351 = vmatprep.subr.bf16.mxu0 0
    %3352 = vmatpush1.bf16.msra.mxu0 %v3328
    %3353 = vmatprep.subr.bf16.mxu0 0
    %3354 = vmatpush1.bf16.msra.mxu0 0
    %3355 = vmatprep.subr.bf16.mxu0 0
    %3356 = vmatpush1.bf16.msra.mxu0 0
    %3357 = vmatprep.subr.bf16.mxu0 0
    %3358 = vmatpush1.bf16.msra.mxu0 0
    %3359 = vmatprep.subr.bf16.mxu0 0
    %3360 = vmatpush1.bf16.msra.mxu0 0
    %3361 = vmatprep.subr.bf16.mxu0 0
    %3362 = vmatpush1.bf16.msra.mxu0 0
    %3363 = vmatprep.subr.bf16.mxu0 0
    %3364 = vmatpush1.bf16.msra.mxu0 0
    %3365 = vmatprep.subr.bf16.mxu0 0
    %3366 = vmatpush1.bf16.msra.mxu0 0
    %3367 = vmatprep.subr.bf16.mxu0 0
    %3368 = vmatpush1.bf16.msra.mxu0 0
    %3369 = vmatprep.mubr.bf16.mxu0 0
    %3370 = vmatmul.mubr.bf16.gmra.mrb[0].mxu0 %v3265
    %v3371 = vpop.f32.mrb[0].mxu0
    %v3372 = vadd.f32 %v3287, %v3371
    %v3373 = vpop.f32.mrb[0].mxu0
    %v3374 = vpop.f32.mrb[0].mxu0
    %v3375 = vpop.f32.mrb[0].mxu0
    %3376 = vdwg.mxu0
    %3377 = vst [vmem:[#allocation14] sm:$0x3] %v3372
    // Predicated region
    $region58: #{tpu_custom_call.1} parent=1 // pred_check
      _
    $region59: #{tpu_custom_call.1} parent=1 // pred_check_branch
      %3379 = sbr.rel (0) target = $region61
    $region60: #{tpu_custom_call.1} parent=1 // pred_region
      %s3381 = ssub.s32 32, 32
      %3382 = vsyncadd [#allocation4], %s3381
      %s3384 = sshll.u32 [#allocation14], 4
      %s3385 = int_to_ptr.vmem [resolvable:$true] %s3384
      %3387 = dma.vmem_to_hbm [thread:$0]  %s3385, 32, %s7, [#allocation4]
    $region61: #{tpu_custom_call.1} parent=1 // pred_fallthru
      _
    // Predicated region
    $region62: #{tpu_custom_call.1} parent=1 // pred_check
      _
    $region63: #{tpu_custom_call.1} parent=1 // pred_check_branch
      %3389 = sbr.rel (0) target = $region65
    $region64: #{tpu_custom_call.1} parent=1 // pred_region
      %3390 = dma.done [#allocation4], 32
    $region65: #{tpu_custom_call.1} parent=1 // pred_fallthru
      _
    %3391 = vsyncpa [#allocation3], 1
    %3392 = vsyncpa [#allocation6], 1
    %3393 = vsyncpa [#allocation9], 1
    %3394 = vsyncpa [#allocation12], 1
    %3395 = vsyncpa [#allocation4], 1

</llo_original>
